<compile_context>
chip_gen: v7x
topology: tpu7x:2x2x1
jax: 0.10.0
libtpu: 0.0.40
codegen_flags: <defaults>
</compile_context>

<pallas_src>
import functools

import jax
import jax.numpy as jnp
from jax.experimental import pallas as pl
from jax.experimental.pallas import tpu as pltpu


def _elu(v):
    # ELU with alpha=1.0 (torch.nn.ELU / F.elu defaults), computed in f32.
    # The exp argument is clamped so the discarded branch never overflows.
    return jnp.where(v > 0, v, jnp.exp(jnp.minimum(v, 0.0)) - 1.0)


# ----------------------------------------------------------------------------
# Fused Pallas kernel: whole LINKX forward for one row-tile, VMEM-resident.
# ----------------------------------------------------------------------------
def _fused_linkx_kernel(*refs, n_x, n_a, n_f, hdim):
    # refs layout (all inputs first, output last):
    #   x, adj,
    #   [wx_i, bx_i] * n_x,   [wa_i, ba_i] * n_a,
    #   w_linkx,
    #   [wf_i, bf_i] * n_f,
    #   o_ref
    o_ref = refs[-1]
    it = iter(refs[:-1])
    x_ref, adj_ref = next(it), next(it)
    x_layers = [(next(it), next(it)) for _ in range(n_x)]
    a_layers = [(next(it), next(it)) for _ in range(n_a)]
    w_linkx_ref = next(it)
    f_layers = [(next(it), next(it)) for _ in range(n_f)]

    def mlp(v, layers, elu_on_last):
        # bf16 on the MXU, f32 accumulation, f32 bias add / ELU (v5e-safe).
        last = len(layers) - 1
        for i, (w_ref, b_ref) in enumerate(layers):
            v = jnp.dot(v.astype(jnp.bfloat16), w_ref[...],
                        preferred_element_type=jnp.float32)
            v = v + b_ref[...]                       # (1, out) broadcasts over rows
            if elu_on_last or i < last:
                v = _elu(v)
        return v

    hx = mlp(x_ref[...], x_layers, elu_on_last=True)      # (tm, h) f32
    ha = mlp(adj_ref[...], a_layers, elu_on_last=True)    # (tm, h) f32

    # LINKXLayer: hstack((out_a, out_x)) @ W  ==  a @ W[:h] + x @ W[h:]
    # Slice the ref (free static view), not a loaded value.
    mat = jnp.dot(ha.astype(jnp.bfloat16), w_linkx_ref[:hdim, :],
                  preferred_element_type=jnp.float32)
    mat = mat + jnp.dot(hx.astype(jnp.bfloat16), w_linkx_ref[hdim:, :],
                        preferred_element_type=jnp.float32)
    mat = _elu(mat + hx + ha)                              # + F.elu in LINKX.forward

    # mlp_f: every layer but the final Linear(h//2 -> 1) has ELU.
    y = mlp(mat, f_layers, elu_on_last=False)              # (tm, 1)

    # Lane-dense store: broadcast the 1-wide result across the 128-lane slab.
    o_ref[...] = jnp.broadcast_to(y, o_ref.shape).astype(o_ref.dtype)


# ----------------------------------------------------------------------------
# Parameter construction (deterministic, in-script)
# ----------------------------------------------------------------------------
def init_params(key, n_nodes, dx, h, n_pre, n_post):
    keys = iter(jax.random.split(key, 128))

    def lin(fan_in, fan_out):
        # Same spirit as PyTorch Linear default init (uniform +- 1/sqrt(fan_in)).
        bound = 1.0 / jnp.sqrt(jnp.float32(fan_in))
        w = jax.random.uniform(next(keys), (fan_in, fan_out), jnp.float32,
                               -bound, bound)
        b = jax.random.uniform(next(keys), (fan_out,), jnp.float32,
                               -bound, bound)
        return w, b

    mlp_x = [lin(dx, h)] + [lin(h, h) for _ in range(n_pre)]
    mlp_a = [lin(n_nodes, h)] + [lin(h, h) for _ in range(n_pre)]

    mlp_f = []
    for i in range(n_post):
        if i == n_post - 1:
            mlp_f.append(lin(h, h // 2))
        else:
            mlp_f.append(lin(h, h))
    mlp_f.append(lin(h // 2, 1))  # final projection, NO activation

    # Xavier-normal init for the LINKXLayer weight of shape (2h, h).
    std = jnp.sqrt(2.0 / jnp.float32(2 * h + h))
    linkx_w = std * jax.random.normal(next(keys), (2 * h, h), jnp.float32)

    return dict(mlp_x=mlp_x, mlp_a=mlp_a, mlp_f=mlp_f, linkx_w=linkx_w)


# ----------------------------------------------------------------------------
# Forward pass: one fused, row-tiled pallas_call
# ----------------------------------------------------------------------------
def linkx_forward(x, edge_index, params, n_nodes, tile_m=128, out_lanes=128):
    n = x.shape[0]
    # Row tile must divide N and respect the (8, 128) sublane constraint
    # (or equal the full extent).
    tile_m = min(tile_m, n)
    assert n % tile_m == 0, f"N={n} must be divisible by tile_m={tile_m}"

    # Glue: pyg_utils.to_dense_adj(edge_index).squeeze()  (unit edge weights;
    # duplicate edges sum, matching to_dense_adj).
    adj = jnp.zeros((n_nodes, n_nodes), jnp.float32)
    adj = adj.at[edge_index[0], edge_index[1]].add(1.0)

    # bf16 for everything that feeds the MXU; biases stay f32 (added in f32).
    operands, in_specs = [], []

    def add_row_tiled(arr):
        operands.append(arr)
        in_specs.append(pl.BlockSpec((tile_m, arr.shape[1]), lambda i: (i, 0)))

    def add_resident(arr):
        operands.append(arr)
        in_specs.append(pl.BlockSpec(arr.shape, lambda i: (0, 0)))

    add_row_tiled(x.astype(jnp.bfloat16))
    add_row_tiled(adj.astype(jnp.bfloat16))
    for w, b in params["mlp_x"]:
        add_resident(w.astype(jnp.bfloat16)); add_resident(b.reshape(1, -1))
    for w, b in params["mlp_a"]:
        add_resident(w.astype(jnp.bfloat16)); add_resident(b.reshape(1, -1))
    add_resident(params["linkx_w"].astype(jnp.bfloat16))
    for w, b in params["mlp_f"]:
        add_resident(w.astype(jnp.bfloat16)); add_resident(b.reshape(1, -1))

    hdim = params["linkx_w"].shape[1]
    kernel = functools.partial(
        _fused_linkx_kernel,
        n_x=len(params["mlp_x"]),
        n_a=len(params["mlp_a"]),
        n_f=len(params["mlp_f"]),
        hdim=hdim,
    )

    # Advisory cost hint for XLA's scheduler around the custom call.
    flops = 2 * n * params["linkx_w"].shape[0] * hdim
    transcendentals = 0
    for w, _ in params["mlp_x"] + params["mlp_a"] + params["mlp_f"]:
        flops += 2 * n * w.shape[0] * w.shape[1]
        transcendentals += n * w.shape[1]
    bytes_accessed = sum(int(op.size) * op.dtype.itemsize for op in operands)
    bytes_accessed += n * out_lanes * 4
    cost = pl.CostEstimate(flops=flops, transcendentals=transcendentals,
                           bytes_accessed=bytes_accessed)

    out = pl.pallas_call(
        kernel,
        out_shape=jax.ShapeDtypeStruct((n, out_lanes), jnp.float32),
        grid=(n // tile_m,),
        in_specs=in_specs,
        out_specs=pl.BlockSpec((tile_m, out_lanes), lambda i: (i, 0)),
        compiler_params=pltpu.CompilerParams(
            # Row tiles are independent -> shard across v7x's 2 TensorCores.
            dimension_semantics=("parallel",),
            # 48 MiB is safe on v7x (64 MiB physical) and leaves headroom on
            # v5e/v6e (128 MiB).  Toy shapes use a tiny fraction of this.
            vmem_limit_bytes=48 * 1024 * 1024,
        ),
        cost_estimate=cost,
    )(*operands)
    return out[:, :1]   # (N, 1) — matches the PyTorch module's output


# ----------------------------------------------------------------------------
# Pure-JAX reference (mirrors the kernel's bf16-at-the-dot numerics).
# ----------------------------------------------------------------------------
def linkx_reference(x, edge_index, params, n_nodes):
    def bdot(a, b):
        return jnp.dot(a.astype(jnp.bfloat16), b.astype(jnp.bfloat16),
                       preferred_element_type=jnp.float32)

    adj = jnp.zeros((n_nodes, n_nodes), jnp.float32)
    adj = adj.at[edge_index[0], edge_index[1]].add(1.0)
    h = x
    for w, b in params["mlp_x"]:
        h = _elu(bdot(h, w) + b)
    a = adj
    for w, b in params["mlp_a"]:
        a = _elu(bdot(a, w) + b)
    mat = _elu(bdot(jnp.concatenate([a, h], axis=1), params["linkx_w"]) + h + a)
    y = mat
    for w, b in params["mlp_f"][:-1]:
        y = _elu(bdot(y, w) + b)
    w_last, b_last = params["mlp_f"][-1]
    return bdot(y, w_last) + b_last


# ----------------------------------------------------------------------------
if __name__ == "__main__":
    key = jax.random.PRNGKey(0)
    k_param, k_x = jax.random.split(key)

    # Small, self-consistent shapes (N kept a multiple of the row tile so the
    # grid actually exercises the pipelining path):
    N = 256         # number of nodes -> adjacency is (N, N), so input_dim_a = N
    DX = 8          # input_dim_x (node feature dim)
    HID = 32        # config.model.pre_mp.dim
    N_PRE = 1       # config.model.pre_mp.n_layers
    N_POST = 2      # config.model.post_mp.n_layers
    TILE_M = 128    # row tile (grid of 2 steps; double-buffered adj/x tiles)

    params = init_params(k_param, N, DX, HID, N_PRE, N_POST)

    x = jax.random.normal(k_x, (N, DX), jnp.float32)
    # Deterministic ring graph (both directions) as edge_index of shape (2, E).
    src = jnp.concatenate([jnp.arange(N), (jnp.arange(N) + 1) % N])
    dst = jnp.concatenate([(jnp.arange(N) + 1) % N, jnp.arange(N)])
    edge_index = jnp.stack([src, dst]).astype(jnp.int32)

    y_hat = linkx_forward(x, edge_index, params, N, tile_m=TILE_M)
    jax.block_until_ready(y_hat)
    assert y_hat.shape == (N, 1)

    # Correctness check against the pure-JAX reference (same bf16-at-dot
    # numerics; tolerance absorbs MXU vs XLA rounding/ordering differences).
    y_ref = linkx_reference(x, edge_index, params, N)
    err = float(jnp.max(jnp.abs(y_hat - y_ref)))
    assert err < 2e-2, f"mismatch vs reference: {err}"

    print("KERNEL_OK")
</pallas_src>

<mosaic_0001>
module attributes {stable_mosaic.version = 11 : i64} {
  func.func @_fused_linkx_kernel(%arg0: i32, %arg1: memref<128x8xbf16, #tpu.memory_space<vmem>>, %arg2: memref<128x256xbf16, #tpu.memory_space<vmem>>, %arg3: memref<8x32xbf16, #tpu.memory_space<vmem>>, %arg4: memref<1x32xf32, #tpu.memory_space<vmem>>, %arg5: memref<32x32xbf16, #tpu.memory_space<vmem>>, %arg6: memref<1x32xf32, #tpu.memory_space<vmem>>, %arg7: memref<256x32xbf16, #tpu.memory_space<vmem>>, %arg8: memref<1x32xf32, #tpu.memory_space<vmem>>, %arg9: memref<32x32xbf16, #tpu.memory_space<vmem>>, %arg10: memref<1x32xf32, #tpu.memory_space<vmem>>, %arg11: memref<64x32xbf16, #tpu.memory_space<vmem>>, %arg12: memref<32x32xbf16, #tpu.memory_space<vmem>>, %arg13: memref<1x32xf32, #tpu.memory_space<vmem>>, %arg14: memref<32x16xbf16, #tpu.memory_space<vmem>>, %arg15: memref<1x16xf32, #tpu.memory_space<vmem>>, %arg16: memref<16x1xbf16, #tpu.memory_space<vmem>>, %arg17: memref<1x1xf32, #tpu.memory_space<vmem>>, %arg18: memref<128x128xf32, #tpu.memory_space<vmem>>) attributes {dimension_semantics = [#tpu.dimension_semantics<parallel>], iteration_bounds = array<i64: 2>, scalar_prefetch = 0 : i64, scratch_operands = 0 : i64, tpu.core_type = #tpu.core_type<tc>, window_params = [{transform_indices = @transform_0, window_bounds = array<i64: 128, 8>}, {transform_indices = @transform_1, window_bounds = array<i64: 128, 256>}, {pipeline_mode = #tpu.pipeline_mode<synchronous>, transform_indices = @transform_2, window_bounds = array<i64: 8, 32>}, {pipeline_mode = #tpu.pipeline_mode<synchronous>, transform_indices = @transform_3, window_bounds = array<i64: 1, 32>}, {pipeline_mode = #tpu.pipeline_mode<synchronous>, transform_indices = @transform_4, window_bounds = array<i64: 32, 32>}, {pipeline_mode = #tpu.pipeline_mode<synchronous>, transform_indices = @transform_5, window_bounds = array<i64: 1, 32>}, {pipeline_mode = #tpu.pipeline_mode<synchronous>, transform_indices = @transform_6, window_bounds = array<i64: 256, 32>}, {pipeline_mode = #tpu.pipeline_mode<synchronous>, transform_indices = @transform_7, window_bounds = array<i64: 1, 32>}, {pipeline_mode = #tpu.pipeline_mode<synchronous>, transform_indices = @transform_8, window_bounds = array<i64: 32, 32>}, {pipeline_mode = #tpu.pipeline_mode<synchronous>, transform_indices = @transform_9, window_bounds = array<i64: 1, 32>}, {pipeline_mode = #tpu.pipeline_mode<synchronous>, transform_indices = @transform_10, window_bounds = array<i64: 64, 32>}, {pipeline_mode = #tpu.pipeline_mode<synchronous>, transform_indices = @transform_11, window_bounds = array<i64: 32, 32>}, {pipeline_mode = #tpu.pipeline_mode<synchronous>, transform_indices = @transform_12, window_bounds = array<i64: 1, 32>}, {pipeline_mode = #tpu.pipeline_mode<synchronous>, transform_indices = @transform_13, window_bounds = array<i64: 32, 16>}, {pipeline_mode = #tpu.pipeline_mode<synchronous>, transform_indices = @transform_14, window_bounds = array<i64: 1, 16>}, {pipeline_mode = #tpu.pipeline_mode<synchronous>, transform_indices = @transform_15, window_bounds = array<i64: 16, 1>}, {pipeline_mode = #tpu.pipeline_mode<synchronous>, transform_indices = @transform_16, window_bounds = array<i64: 1, 1>}, {transform_indices = @transform_17, window_bounds = array<i64: 128, 128>}]} {
    %c0 = arith.constant 0 : index
    %c0_0 = arith.constant 0 : index
    %0 = vector.load %arg1[%c0, %c0_0] : memref<128x8xbf16, #tpu.memory_space<vmem>>, vector<128x8xbf16>
    %c0_1 = arith.constant 0 : index
    %c0_2 = arith.constant 0 : index
    %1 = vector.load %arg3[%c0_1, %c0_2] : memref<8x32xbf16, #tpu.memory_space<vmem>>, vector<8x32xbf16>
    %cst = arith.constant dense<0.000000e+00> : vector<128x32xf32>
    %2 = tpu.matmul %0, %1, %cst {dimension_numbers = #tpu.dot_dimension_numbers<[1], [0], [0], [1], [0, 0, 1, 1], [], []>} : vector<128x8xbf16>, vector<8x32xbf16>, vector<128x32xf32> -> vector<128x32xf32>
    %c0_3 = arith.constant 0 : index
    %c0_4 = arith.constant 0 : index
    %3 = vector.load %arg4[%c0_3, %c0_4] : memref<1x32xf32, #tpu.memory_space<vmem>>, vector<1x32xf32>
    %4 = vector.broadcast %3 : vector<1x32xf32> to vector<128x32xf32>
    %5 = arith.addf %2, %4 : vector<128x32xf32>
    %cst_5 = arith.constant 0.000000e+00 : f32
    %6 = vector.broadcast %cst_5 : f32 to vector<128x32xf32>
    %7 = arith.cmpf ogt, %5, %6 : vector<128x32xf32>
    %cst_6 = arith.constant 0.000000e+00 : f32
    %8 = vector.broadcast %cst_6 : f32 to vector<128x32xf32>
    %9 = arith.minimumf %5, %8 : vector<128x32xf32>
    %10 = math.exp %9 : vector<128x32xf32>
    %cst_7 = arith.constant 1.000000e+00 : f32
    %11 = vector.broadcast %cst_7 : f32 to vector<128x32xf32>
    %12 = arith.subf %10, %11 : vector<128x32xf32>
    %13 = arith.select %7, %5, %12 : vector<128x32xi1>, vector<128x32xf32>
    %14 = arith.truncf %13 : vector<128x32xf32> to vector<128x32xbf16>
    %c0_8 = arith.constant 0 : index
    %c0_9 = arith.constant 0 : index
    %15 = vector.load %arg5[%c0_8, %c0_9] : memref<32x32xbf16, #tpu.memory_space<vmem>>, vector<32x32xbf16>
    %cst_10 = arith.constant dense<0.000000e+00> : vector<128x32xf32>
    %16 = tpu.matmul %14, %15, %cst_10 {dimension_numbers = #tpu.dot_dimension_numbers<[1], [0], [0], [1], [0, 0, 1, 1], [], []>} : vector<128x32xbf16>, vector<32x32xbf16>, vector<128x32xf32> -> vector<128x32xf32>
    %c0_11 = arith.constant 0 : index
    %c0_12 = arith.constant 0 : index
    %17 = vector.load %arg6[%c0_11, %c0_12] : memref<1x32xf32, #tpu.memory_space<vmem>>, vector<1x32xf32>
    %18 = vector.broadcast %17 : vector<1x32xf32> to vector<128x32xf32>
    %19 = arith.addf %16, %18 : vector<128x32xf32>
    %cst_13 = arith.constant 0.000000e+00 : f32
    %20 = vector.broadcast %cst_13 : f32 to vector<128x32xf32>
    %21 = arith.cmpf ogt, %19, %20 : vector<128x32xf32>
    %cst_14 = arith.constant 0.000000e+00 : f32
    %22 = vector.broadcast %cst_14 : f32 to vector<128x32xf32>
    %23 = arith.minimumf %19, %22 : vector<128x32xf32>
    %24 = math.exp %23 : vector<128x32xf32>
    %cst_15 = arith.constant 1.000000e+00 : f32
    %25 = vector.broadcast %cst_15 : f32 to vector<128x32xf32>
    %26 = arith.subf %24, %25 : vector<128x32xf32>
    %27 = arith.select %21, %19, %26 : vector<128x32xi1>, vector<128x32xf32>
    %c0_16 = arith.constant 0 : index
    %c0_17 = arith.constant 0 : index
    %28 = vector.load %arg2[%c0_16, %c0_17] : memref<128x256xbf16, #tpu.memory_space<vmem>>, vector<128x256xbf16>
    %c0_18 = arith.constant 0 : index
    %c0_19 = arith.constant 0 : index
    %29 = vector.load %arg7[%c0_18, %c0_19] : memref<256x32xbf16, #tpu.memory_space<vmem>>, vector<256x32xbf16>
    %cst_20 = arith.constant dense<0.000000e+00> : vector<128x32xf32>
    %30 = tpu.matmul %28, %29, %cst_20 {dimension_numbers = #tpu.dot_dimension_numbers<[1], [0], [0], [1], [0, 0, 1, 1], [], []>} : vector<128x256xbf16>, vector<256x32xbf16>, vector<128x32xf32> -> vector<128x32xf32>
    %c0_21 = arith.constant 0 : index
    %c0_22 = arith.constant 0 : index
    %31 = vector.load %arg8[%c0_21, %c0_22] : memref<1x32xf32, #tpu.memory_space<vmem>>, vector<1x32xf32>
    %32 = vector.broadcast %31 : vector<1x32xf32> to vector<128x32xf32>
    %33 = arith.addf %30, %32 : vector<128x32xf32>
    %cst_23 = arith.constant 0.000000e+00 : f32
    %34 = vector.broadcast %cst_23 : f32 to vector<128x32xf32>
    %35 = arith.cmpf ogt, %33, %34 : vector<128x32xf32>
    %cst_24 = arith.constant 0.000000e+00 : f32
    %36 = vector.broadcast %cst_24 : f32 to vector<128x32xf32>
    %37 = arith.minimumf %33, %36 : vector<128x32xf32>
    %38 = math.exp %37 : vector<128x32xf32>
    %cst_25 = arith.constant 1.000000e+00 : f32
    %39 = vector.broadcast %cst_25 : f32 to vector<128x32xf32>
    %40 = arith.subf %38, %39 : vector<128x32xf32>
    %41 = arith.select %35, %33, %40 : vector<128x32xi1>, vector<128x32xf32>
    %42 = arith.truncf %41 : vector<128x32xf32> to vector<128x32xbf16>
    %c0_26 = arith.constant 0 : index
    %c0_27 = arith.constant 0 : index
    %43 = vector.load %arg9[%c0_26, %c0_27] : memref<32x32xbf16, #tpu.memory_space<vmem>>, vector<32x32xbf16>
    %cst_28 = arith.constant dense<0.000000e+00> : vector<128x32xf32>
    %44 = tpu.matmul %42, %43, %cst_28 {dimension_numbers = #tpu.dot_dimension_numbers<[1], [0], [0], [1], [0, 0, 1, 1], [], []>} : vector<128x32xbf16>, vector<32x32xbf16>, vector<128x32xf32> -> vector<128x32xf32>
    %c0_29 = arith.constant 0 : index
    %c0_30 = arith.constant 0 : index
    %45 = vector.load %arg10[%c0_29, %c0_30] : memref<1x32xf32, #tpu.memory_space<vmem>>, vector<1x32xf32>
    %46 = vector.broadcast %45 : vector<1x32xf32> to vector<128x32xf32>
    %47 = arith.addf %44, %46 : vector<128x32xf32>
    %cst_31 = arith.constant 0.000000e+00 : f32
    %48 = vector.broadcast %cst_31 : f32 to vector<128x32xf32>
    %49 = arith.cmpf ogt, %47, %48 : vector<128x32xf32>
    %cst_32 = arith.constant 0.000000e+00 : f32
    %50 = vector.broadcast %cst_32 : f32 to vector<128x32xf32>
    %51 = arith.minimumf %47, %50 : vector<128x32xf32>
    %52 = math.exp %51 : vector<128x32xf32>
    %cst_33 = arith.constant 1.000000e+00 : f32
    %53 = vector.broadcast %cst_33 : f32 to vector<128x32xf32>
    %54 = arith.subf %52, %53 : vector<128x32xf32>
    %55 = arith.select %49, %47, %54 : vector<128x32xi1>, vector<128x32xf32>
    %56 = arith.truncf %55 : vector<128x32xf32> to vector<128x32xbf16>
    %c0_34 = arith.constant 0 : index
    %c0_35 = arith.constant 0 : index
    %57 = vector.load %arg11[%c0_34, %c0_35] : memref<64x32xbf16, #tpu.memory_space<vmem>>, vector<32x32xbf16>
    %cst_36 = arith.constant dense<0.000000e+00> : vector<128x32xf32>
    %58 = tpu.matmul %56, %57, %cst_36 {dimension_numbers = #tpu.dot_dimension_numbers<[1], [0], [0], [1], [0, 0, 1, 1], [], []>} : vector<128x32xbf16>, vector<32x32xbf16>, vector<128x32xf32> -> vector<128x32xf32>
    %59 = arith.truncf %27 : vector<128x32xf32> to vector<128x32xbf16>
    %c32 = arith.constant 32 : index
    %c0_37 = arith.constant 0 : index
    %60 = vector.load %arg11[%c32, %c0_37] : memref<64x32xbf16, #tpu.memory_space<vmem>>, vector<32x32xbf16>
    %cst_38 = arith.constant dense<0.000000e+00> : vector<128x32xf32>
    %61 = tpu.matmul %59, %60, %cst_38 {dimension_numbers = #tpu.dot_dimension_numbers<[1], [0], [0], [1], [0, 0, 1, 1], [], []>} : vector<128x32xbf16>, vector<32x32xbf16>, vector<128x32xf32> -> vector<128x32xf32>
    %62 = arith.addf %58, %61 : vector<128x32xf32>
    %63 = arith.addf %62, %27 : vector<128x32xf32>
    %64 = arith.addf %63, %55 : vector<128x32xf32>
    %cst_39 = arith.constant 0.000000e+00 : f32
    %65 = vector.broadcast %cst_39 : f32 to vector<128x32xf32>
    %66 = arith.cmpf ogt, %64, %65 : vector<128x32xf32>
    %cst_40 = arith.constant 0.000000e+00 : f32
    %67 = vector.broadcast %cst_40 : f32 to vector<128x32xf32>
    %68 = arith.minimumf %64, %67 : vector<128x32xf32>
    %69 = math.exp %68 : vector<128x32xf32>
    %cst_41 = arith.constant 1.000000e+00 : f32
    %70 = vector.broadcast %cst_41 : f32 to vector<128x32xf32>
    %71 = arith.subf %69, %70 : vector<128x32xf32>
    %72 = arith.select %66, %64, %71 : vector<128x32xi1>, vector<128x32xf32>
    %73 = arith.truncf %72 : vector<128x32xf32> to vector<128x32xbf16>
    %c0_42 = arith.constant 0 : index
    %c0_43 = arith.constant 0 : index
    %74 = vector.load %arg12[%c0_42, %c0_43] : memref<32x32xbf16, #tpu.memory_space<vmem>>, vector<32x32xbf16>
    %cst_44 = arith.constant dense<0.000000e+00> : vector<128x32xf32>
    %75 = tpu.matmul %73, %74, %cst_44 {dimension_numbers = #tpu.dot_dimension_numbers<[1], [0], [0], [1], [0, 0, 1, 1], [], []>} : vector<128x32xbf16>, vector<32x32xbf16>, vector<128x32xf32> -> vector<128x32xf32>
    %c0_45 = arith.constant 0 : index
    %c0_46 = arith.constant 0 : index
    %76 = vector.load %arg13[%c0_45, %c0_46] : memref<1x32xf32, #tpu.memory_space<vmem>>, vector<1x32xf32>
    %77 = vector.broadcast %76 : vector<1x32xf32> to vector<128x32xf32>
    %78 = arith.addf %75, %77 : vector<128x32xf32>
    %cst_47 = arith.constant 0.000000e+00 : f32
    %79 = vector.broadcast %cst_47 : f32 to vector<128x32xf32>
    %80 = arith.cmpf ogt, %78, %79 : vector<128x32xf32>
    %cst_48 = arith.constant 0.000000e+00 : f32
    %81 = vector.broadcast %cst_48 : f32 to vector<128x32xf32>
    %82 = arith.minimumf %78, %81 : vector<128x32xf32>
    %83 = math.exp %82 : vector<128x32xf32>
    %cst_49 = arith.constant 1.000000e+00 : f32
    %84 = vector.broadcast %cst_49 : f32 to vector<128x32xf32>
    %85 = arith.subf %83, %84 : vector<128x32xf32>
    %86 = arith.select %80, %78, %85 : vector<128x32xi1>, vector<128x32xf32>
    %87 = arith.truncf %86 : vector<128x32xf32> to vector<128x32xbf16>
    %c0_50 = arith.constant 0 : index
    %c0_51 = arith.constant 0 : index
    %88 = vector.load %arg14[%c0_50, %c0_51] : memref<32x16xbf16, #tpu.memory_space<vmem>>, vector<32x16xbf16>
    %cst_52 = arith.constant dense<0.000000e+00> : vector<128x16xf32>
    %89 = tpu.matmul %87, %88, %cst_52 {dimension_numbers = #tpu.dot_dimension_numbers<[1], [0], [0], [1], [0, 0, 1, 1], [], []>} : vector<128x32xbf16>, vector<32x16xbf16>, vector<128x16xf32> -> vector<128x16xf32>
    %c0_53 = arith.constant 0 : index
    %c0_54 = arith.constant 0 : index
    %90 = vector.load %arg15[%c0_53, %c0_54] : memref<1x16xf32, #tpu.memory_space<vmem>>, vector<1x16xf32>
    %91 = vector.broadcast %90 : vector<1x16xf32> to vector<128x16xf32>
    %92 = arith.addf %89, %91 : vector<128x16xf32>
    %cst_55 = arith.constant 0.000000e+00 : f32
    %93 = vector.broadcast %cst_55 : f32 to vector<128x16xf32>
    %94 = arith.cmpf ogt, %92, %93 : vector<128x16xf32>
    %cst_56 = arith.constant 0.000000e+00 : f32
    %95 = vector.broadcast %cst_56 : f32 to vector<128x16xf32>
    %96 = arith.minimumf %92, %95 : vector<128x16xf32>
    %97 = math.exp %96 : vector<128x16xf32>
    %cst_57 = arith.constant 1.000000e+00 : f32
    %98 = vector.broadcast %cst_57 : f32 to vector<128x16xf32>
    %99 = arith.subf %97, %98 : vector<128x16xf32>
    %100 = arith.select %94, %92, %99 : vector<128x16xi1>, vector<128x16xf32>
    %101 = arith.truncf %100 : vector<128x16xf32> to vector<128x16xbf16>
    %c0_58 = arith.constant 0 : index
    %c0_59 = arith.constant 0 : index
    %102 = vector.load %arg16[%c0_58, %c0_59] : memref<16x1xbf16, #tpu.memory_space<vmem>>, vector<16x1xbf16>
    %cst_60 = arith.constant dense<0.000000e+00> : vector<128x1xf32>
    %103 = tpu.matmul %101, %102, %cst_60 {dimension_numbers = #tpu.dot_dimension_numbers<[1], [0], [0], [1], [0, 0, 1, 1], [], []>} : vector<128x16xbf16>, vector<16x1xbf16>, vector<128x1xf32> -> vector<128x1xf32>
    %c0_61 = arith.constant 0 : index
    %c0_62 = arith.constant 0 : index
    %104 = vector.load %arg17[%c0_61, %c0_62] : memref<1x1xf32, #tpu.memory_space<vmem>>, vector<1x1xf32>
    %105 = vector.broadcast %104 : vector<1x1xf32> to vector<128x1xf32>
    %106 = arith.addf %103, %105 : vector<128x1xf32>
    %107 = vector.shape_cast %106 : vector<128x1xf32> to vector<128x1xf32>
    %108 = vector.broadcast %107 : vector<128x1xf32> to vector<128x128xf32>
    %c0_63 = arith.constant 0 : index
    %c0_64 = arith.constant 0 : index
    %109 = vector.load %arg18[%c0_63, %c0_64] : memref<128x128xf32, #tpu.memory_space<vmem>>, vector<128x128xf32>
    tpu.vector_store %arg18[%c0_63, %c0_64], %108 {strides = array<i32>} : memref<128x128xf32, #tpu.memory_space<vmem>>, vector<128x128xf32>,
    return
  }
  func.func @transform_0(%arg0: i32) -> (i32, i32) {
    %c0_i32 = arith.constant 0 : i32
    %c0_i32_0 = arith.constant 0 : i32
    return %arg0, %c0_i32 : i32, i32
  }
  func.func @transform_1(%arg0: i32) -> (i32, i32) {
    %c0_i32 = arith.constant 0 : i32
    %c0_i32_0 = arith.constant 0 : i32
    return %arg0, %c0_i32 : i32, i32
  }
  func.func @transform_2(%arg0: i32) -> (i32, i32) {
    %c0_i32 = arith.constant 0 : i32
    %c0_i32_0 = arith.constant 0 : i32
    %c0_i32_1 = arith.constant 0 : i32
    return %c0_i32, %c0_i32_0 : i32, i32
  }
  func.func @transform_3(%arg0: i32) -> (i32, i32) {
    %c0_i32 = arith.constant 0 : i32
    %c0_i32_0 = arith.constant 0 : i32
    %c0_i32_1 = arith.constant 0 : i32
    return %c0_i32, %c0_i32_0 : i32, i32
  }
  func.func @transform_4(%arg0: i32) -> (i32, i32) {
    %c0_i32 = arith.constant 0 : i32
    %c0_i32_0 = arith.constant 0 : i32
    %c0_i32_1 = arith.constant 0 : i32
    return %c0_i32, %c0_i32_0 : i32, i32
  }
  func.func @transform_5(%arg0: i32) -> (i32, i32) {
    %c0_i32 = arith.constant 0 : i32
    %c0_i32_0 = arith.constant 0 : i32
    %c0_i32_1 = arith.constant 0 : i32
    return %c0_i32, %c0_i32_0 : i32, i32
  }
  func.func @transform_6(%arg0: i32) -> (i32, i32) {
    %c0_i32 = arith.constant 0 : i32
    %c0_i32_0 = arith.constant 0 : i32
    %c0_i32_1 = arith.constant 0 : i32
    return %c0_i32, %c0_i32_0 : i32, i32
  }
  func.func @transform_7(%arg0: i32) -> (i32, i32) {
    %c0_i32 = arith.constant 0 : i32
    %c0_i32_0 = arith.constant 0 : i32
    %c0_i32_1 = arith.constant 0 : i32
    return %c0_i32, %c0_i32_0 : i32, i32
  }
  func.func @transform_8(%arg0: i32) -> (i32, i32) {
    %c0_i32 = arith.constant 0 : i32
    %c0_i32_0 = arith.constant 0 : i32
    %c0_i32_1 = arith.constant 0 : i32
    return %c0_i32, %c0_i32_0 : i32, i32
  }
  func.func @transform_9(%arg0: i32) -> (i32, i32) {
    %c0_i32 = arith.constant 0 : i32
    %c0_i32_0 = arith.constant 0 : i32
    %c0_i32_1 = arith.constant 0 : i32
    return %c0_i32, %c0_i32_0 : i32, i32
  }
  func.func @transform_10(%arg0: i32) -> (i32, i32) {
    %c0_i32 = arith.constant 0 : i32
    %c0_i32_0 = arith.constant 0 : i32
    %c0_i32_1 = arith.constant 0 : i32
    return %c0_i32, %c0_i32_0 : i32, i32
  }
  func.func @transform_11(%arg0: i32) -> (i32, i32) {
    %c0_i32 = arith.constant 0 : i32
    %c0_i32_0 = arith.constant 0 : i32
    %c0_i32_1 = arith.constant 0 : i32
    return %c0_i32, %c0_i32_0 : i32, i32
  }
  func.func @transform_12(%arg0: i32) -> (i32, i32) {
    %c0_i32 = arith.constant 0 : i32
    %c0_i32_0 = arith.constant 0 : i32
    %c0_i32_1 = arith.constant 0 : i32
    return %c0_i32, %c0_i32_0 : i32, i32
  }
  func.func @transform_13(%arg0: i32) -> (i32, i32) {
    %c0_i32 = arith.constant 0 : i32
    %c0_i32_0 = arith.constant 0 : i32
    %c0_i32_1 = arith.constant 0 : i32
    return %c0_i32, %c0_i32_0 : i32, i32
  }
  func.func @transform_14(%arg0: i32) -> (i32, i32) {
    %c0_i32 = arith.constant 0 : i32
    %c0_i32_0 = arith.constant 0 : i32
    %c0_i32_1 = arith.constant 0 : i32
    return %c0_i32, %c0_i32_0 : i32, i32
  }
  func.func @transform_15(%arg0: i32) -> (i32, i32) {
    %c0_i32 = arith.constant 0 : i32
    %c0_i32_0 = arith.constant 0 : i32
    %c0_i32_1 = arith.constant 0 : i32
    return %c0_i32, %c0_i32_0 : i32, i32
  }
  func.func @transform_16(%arg0: i32) -> (i32, i32) {
    %c0_i32 = arith.constant 0 : i32
    %c0_i32_0 = arith.constant 0 : i32
    %c0_i32_1 = arith.constant 0 : i32
    return %c0_i32, %c0_i32_0 : i32, i32
  }
  func.func @transform_17(%arg0: i32) -> (i32, i32) {
    %c0_i32 = arith.constant 0 : i32
    %c0_i32_0 = arith.constant 0 : i32
    return %arg0, %c0_i32 : i32, i32
  }
}

</mosaic_0001>

<llo_original>
// kernel: tpu_custom_call.1
$region0: #{tpu_custom_call.1}
  #allocation0 [shape = 'u32[]', space=smem, size = 0x4, offset = 0x4, fixed_abs, tag = 'smem constant byte address 0x4 - core index']
  #allocation1 [shape = 'u32[144,128]{1,0:T(1,128)}', space=vmem, size = 0x12000, scoped, tag = 'internal scratch']
  #allocation2 [shape = 'f32[1,1]{1,0:T(1,128)S(1)}', space=vmem, size = 0x200, scoped, tag = 'scoped memory for tpu_custom_call.1']
  %s0 = inlined_call_operand.vmem [shape: bf16[256,8], index: 0, kind: input, shape index: {}]
  %s1 = inlined_call_operand.vmem [shape: bf16[256,256], index: 1, kind: input, shape index: {}]
  %s2 = inlined_call_operand.vmem [shape: bf16[8,32], index: 2, kind: input, shape index: {}]
  %s3 = inlined_call_operand.vmem [shape: f32[1,32], index: 3, kind: input, shape index: {}]
  %s4 = inlined_call_operand.vmem [shape: bf16[32,32], index: 4, kind: input, shape index: {}]
  %s5 = inlined_call_operand.vmem [shape: f32[1,32], index: 5, kind: input, shape index: {}]
  %s6 = inlined_call_operand.vmem [shape: bf16[256,32], index: 6, kind: input, shape index: {}]
  %s7 = inlined_call_operand.vmem [shape: f32[1,32], index: 7, kind: input, shape index: {}]
  %s8 = inlined_call_operand.vmem [shape: bf16[32,32], index: 8, kind: input, shape index: {}]
  %s9 = inlined_call_operand.vmem [shape: f32[1,32], index: 9, kind: input, shape index: {}]
  %s10 = inlined_call_operand.vmem [shape: bf16[64,32], index: 10, kind: input, shape index: {}]
  %s11 = inlined_call_operand.vmem [shape: bf16[32,32], index: 11, kind: input, shape index: {}]
  %s12 = inlined_call_operand.vmem [shape: f32[1,32], index: 12, kind: input, shape index: {}]
  %s13 = inlined_call_operand.vmem [shape: bf16[32,16], index: 13, kind: input, shape index: {}]
  %s14 = inlined_call_operand.vmem [shape: f32[1,16], index: 14, kind: input, shape index: {}]
  %s15 = inlined_call_operand.vmem [shape: bf16[16,1], index: 15, kind: input, shape index: {}]
  %s16 = inlined_call_operand.<no memory space> [shape: f32[1,1], index: 16, kind: input, shape index: {}]
  %s17 = inlined_call_operand.hbm [shape: f32[256,128], index: 17, kind: output, shape index: {}]
  %s18 = sld [smem:[#allocation0]]
  $region101: #{tpu_custom_call.1} parent=0
    _
  %s20 = ssub.s32 1, %s18
  %s21 = scalar_select 0, %s20, %s18
  %v22 = vstv %s16
  %23 = vst [vmem:[#allocation2] sm:$0x1] %v22
  $region1: #{tpu_custom_call.1} parent=0
    #allocation3 [shape = 'u8[131072]{0}', space=vmem, size = 0x20000, scoped, tag = 'output window, operand 0']
    #allocation4 [shape = 's32[2]{0}', space=sflag, size = 0x8, scoped, tag = 'scoped memory for tpu_custom_call.1']
    %24 = vsyncpa [#allocation4], 0
    %s25 = scalar_lea.sflag [#allocation4], 1
    %26 = vsyncpa %s25, 0
    loop: start=0, step=1, limit=4
    $region2: #{tpu_custom_call.1} parent=1 // loop_pre_header
      _
    $region3: #{tpu_custom_call.1} parent=1 // loop_header
      %s28 = sphi 0, %s32
      %p29 = scmp.ge.s32.totalorder %s28, 4
      %s38 = sphi 0, %s40
      %s41 = sphi 0, %s38
      %s42 = sphi 0, %s41
      %s58 = sphi 0, %s42
      %s64 = sphi 0, %s66
      %s67 = sphi 0, %s64
      %s68 = sphi 0, %s67
      %s84 = sphi 0, %s68
      %s88 = sphi 0, %s88
      %s90 = sphi 0, %s88
      %s91 = sphi 0, %s90
      %s105 = sphi 0, %s91
      %s109 = sphi 0, %s109
      %s111 = sphi 0, %s109
      %s112 = sphi 0, %s111
      %s126 = sphi 0, %s112
      %s130 = sphi 0, %s130
      %s132 = sphi 0, %s130
      %s133 = sphi 0, %s132
      %s147 = sphi 0, %s133
      %s151 = sphi 0, %s151
      %s153 = sphi 0, %s151
      %s154 = sphi 0, %s153
      %s168 = sphi 0, %s154
      %s172 = sphi 0, %s172
      %s174 = sphi 0, %s172
      %s175 = sphi 0, %s174
      %s189 = sphi 0, %s175
      %s193 = sphi 0, %s193
      %s195 = sphi 0, %s193
      %s196 = sphi 0, %s195
      %s210 = sphi 0, %s196
      %s214 = sphi 0, %s214
      %s216 = sphi 0, %s214
      %s217 = sphi 0, %s216
      %s231 = sphi 0, %s217
      %s235 = sphi 0, %s235
      %s237 = sphi 0, %s235
      %s238 = sphi 0, %s237
      %s252 = sphi 0, %s238
      %s256 = sphi 0, %s256
      %s258 = sphi 0, %s256
      %s259 = sphi 0, %s258
      %s273 = sphi 0, %s259
      %s277 = sphi 0, %s277
      %s279 = sphi 0, %s277
      %s280 = sphi 0, %s279
      %s294 = sphi 0, %s280
      %s298 = sphi 0, %s298
      %s300 = sphi 0, %s298
      %s301 = sphi 0, %s300
      %s315 = sphi 0, %s301
      %s319 = sphi 0, %s319
      %s321 = sphi 0, %s319
      %s322 = sphi 0, %s321
      %s336 = sphi 0, %s322
      %s340 = sphi 0, %s340
      %s342 = sphi 0, %s340
      %s343 = sphi 0, %s342
      %s357 = sphi 0, %s343
      %s361 = sphi 0, %s361
      %s363 = sphi 0, %s361
      %s364 = sphi 0, %s363
      %s378 = sphi 0, %s364
      %s382 = sphi 0, %s382
      %s384 = sphi 0, %s382
      %s385 = sphi 0, %s384
      %s399 = sphi 0, %s385
      %s405 = sphi 0, %s407
      %s408 = sphi 0, %s405
      %s409 = sphi 0, %s408
      %s425 = sphi 0, %s409
    $region4: #{tpu_custom_call.1} parent=1 // loop_header_branch
      %31 = sbr.rel (%p29) target = $region8
    $region5: #{tpu_custom_call.1} parent=1 // loop_body
      %s33 = ssub.s32 %s28, 1
      %s34 = ssub.s32 %s28, 2
      %s35 = sadd.s32 %s28, 1
      %s36 = ssub.s32 %s28, %s35
      %p37 = scmp.eq.s32.totalorder %s36, 0
      %s39 = sadd.s32 %s38, 1
      %s40 = scalar_select %p37, %s38, %s39
      %p43 = pneg %p37
      %p44 = scmp.eq.s32.totalorder %s28, 1
      %p45 = por %p43, %p44
      %p46 = scmp.ne.s32.totalorder %s38, %s41
      %p47 = scmp.eq.s32.totalorder %s28, 0
      %p48 = por %p46, %p47
      %p49 = scmp.ne.s32.totalorder %s38, %s41
      %p50 = scmp.eq.s32.totalorder %s33, 1
      %p51 = por %p49, %p50
      %p52 = scmp.ne.s32.totalorder %s41, %s42
      %p53 = scmp.eq.s32.totalorder %s33, 0
      %p54 = por %p52, %p53
      %p55 = scmp.ne.s32.totalorder %s41, %s42
      %p56 = scmp.eq.s32.totalorder %s34, 1
      %p57 = por %p55, %p56
      %p59 = scmp.ne.s32.totalorder %s42, %s58
      %p60 = scmp.eq.s32.totalorder %s34, 0
      %p61 = por %p59, %p60
      %s62 = ssub.s32 %s28, %s35
      %p63 = scmp.eq.s32.totalorder %s62, 0
      %s65 = sadd.s32 %s64, 1
      %s66 = scalar_select %p63, %s64, %s65
      %p69 = pneg %p63
      %p70 = scmp.eq.s32.totalorder %s28, 1
      %p71 = por %p69, %p70
      %p72 = scmp.ne.s32.totalorder %s64, %s67
      %p73 = scmp.eq.s32.totalorder %s28, 0
      %p74 = por %p72, %p73
      %p75 = scmp.ne.s32.totalorder %s64, %s67
      %p76 = scmp.eq.s32.totalorder %s33, 1
      %p77 = por %p75, %p76
      %p78 = scmp.ne.s32.totalorder %s67, %s68
      %p79 = scmp.eq.s32.totalorder %s33, 0
      %p80 = por %p78, %p79
      %p81 = scmp.ne.s32.totalorder %s67, %s68
      %p82 = scmp.eq.s32.totalorder %s34, 1
      %p83 = por %p81, %p82
      %p85 = scmp.ne.s32.totalorder %s68, %s84
      %p86 = scmp.eq.s32.totalorder %s34, 0
      %p87 = por %p85, %p86
      %s89 = sadd.s32 %s88, 1
      %p92 = scmp.eq.s32.totalorder %s28, 1
      %p93 = scmp.ne.s32.totalorder %s88, %s90
      %p94 = scmp.eq.s32.totalorder %s28, 0
      %p95 = por %p93, %p94
      %p96 = scmp.ne.s32.totalorder %s88, %s90
      %p97 = scmp.eq.s32.totalorder %s33, 1
      %p98 = por %p96, %p97
      %p99 = scmp.ne.s32.totalorder %s90, %s91
      %p100 = scmp.eq.s32.totalorder %s33, 0
      %p101 = por %p99, %p100
      %p102 = scmp.ne.s32.totalorder %s90, %s91
      %p103 = scmp.eq.s32.totalorder %s34, 1
      %p104 = por %p102, %p103
      %p106 = scmp.ne.s32.totalorder %s91, %s105
      %p107 = scmp.eq.s32.totalorder %s34, 0
      %p108 = por %p106, %p107
      %s110 = sadd.s32 %s109, 1
      %p113 = scmp.eq.s32.totalorder %s28, 1
      %p114 = scmp.ne.s32.totalorder %s109, %s111
      %p115 = scmp.eq.s32.totalorder %s28, 0
      %p116 = por %p114, %p115
      %p117 = scmp.ne.s32.totalorder %s109, %s111
      %p118 = scmp.eq.s32.totalorder %s33, 1
      %p119 = por %p117, %p118
      %p120 = scmp.ne.s32.totalorder %s111, %s112
      %p121 = scmp.eq.s32.totalorder %s33, 0
      %p122 = por %p120, %p121
      %p123 = scmp.ne.s32.totalorder %s111, %s112
      %p124 = scmp.eq.s32.totalorder %s34, 1
      %p125 = por %p123, %p124
      %p127 = scmp.ne.s32.totalorder %s112, %s126
      %p128 = scmp.eq.s32.totalorder %s34, 0
      %p129 = por %p127, %p128
      %s131 = sadd.s32 %s130, 1
      %p134 = scmp.eq.s32.totalorder %s28, 1
      %p135 = scmp.ne.s32.totalorder %s130, %s132
      %p136 = scmp.eq.s32.totalorder %s28, 0
      %p137 = por %p135, %p136
      %p138 = scmp.ne.s32.totalorder %s130, %s132
      %p139 = scmp.eq.s32.totalorder %s33, 1
      %p140 = por %p138, %p139
      %p141 = scmp.ne.s32.totalorder %s132, %s133
      %p142 = scmp.eq.s32.totalorder %s33, 0
      %p143 = por %p141, %p142
      %p144 = scmp.ne.s32.totalorder %s132, %s133
      %p145 = scmp.eq.s32.totalorder %s34, 1
      %p146 = por %p144, %p145
      %p148 = scmp.ne.s32.totalorder %s133, %s147
      %p149 = scmp.eq.s32.totalorder %s34, 0
      %p150 = por %p148, %p149
      %s152 = sadd.s32 %s151, 1
      %p155 = scmp.eq.s32.totalorder %s28, 1
      %p156 = scmp.ne.s32.totalorder %s151, %s153
      %p157 = scmp.eq.s32.totalorder %s28, 0
      %p158 = por %p156, %p157
      %p159 = scmp.ne.s32.totalorder %s151, %s153
      %p160 = scmp.eq.s32.totalorder %s33, 1
      %p161 = por %p159, %p160
      %p162 = scmp.ne.s32.totalorder %s153, %s154
      %p163 = scmp.eq.s32.totalorder %s33, 0
      %p164 = por %p162, %p163
      %p165 = scmp.ne.s32.totalorder %s153, %s154
      %p166 = scmp.eq.s32.totalorder %s34, 1
      %p167 = por %p165, %p166
      %p169 = scmp.ne.s32.totalorder %s154, %s168
      %p170 = scmp.eq.s32.totalorder %s34, 0
      %p171 = por %p169, %p170
      %s173 = sadd.s32 %s172, 1
      %p176 = scmp.eq.s32.totalorder %s28, 1
      %p177 = scmp.ne.s32.totalorder %s172, %s174
      %p178 = scmp.eq.s32.totalorder %s28, 0
      %p179 = por %p177, %p178
      %p180 = scmp.ne.s32.totalorder %s172, %s174
      %p181 = scmp.eq.s32.totalorder %s33, 1
      %p182 = por %p180, %p181
      %p183 = scmp.ne.s32.totalorder %s174, %s175
      %p184 = scmp.eq.s32.totalorder %s33, 0
      %p185 = por %p183, %p184
      %p186 = scmp.ne.s32.totalorder %s174, %s175
      %p187 = scmp.eq.s32.totalorder %s34, 1
      %p188 = por %p186, %p187
      %p190 = scmp.ne.s32.totalorder %s175, %s189
      %p191 = scmp.eq.s32.totalorder %s34, 0
      %p192 = por %p190, %p191
      %s194 = sadd.s32 %s193, 1
      %p197 = scmp.eq.s32.totalorder %s28, 1
      %p198 = scmp.ne.s32.totalorder %s193, %s195
      %p199 = scmp.eq.s32.totalorder %s28, 0
      %p200 = por %p198, %p199
      %p201 = scmp.ne.s32.totalorder %s193, %s195
      %p202 = scmp.eq.s32.totalorder %s33, 1
      %p203 = por %p201, %p202
      %p204 = scmp.ne.s32.totalorder %s195, %s196
      %p205 = scmp.eq.s32.totalorder %s33, 0
      %p206 = por %p204, %p205
      %p207 = scmp.ne.s32.totalorder %s195, %s196
      %p208 = scmp.eq.s32.totalorder %s34, 1
      %p209 = por %p207, %p208
      %p211 = scmp.ne.s32.totalorder %s196, %s210
      %p212 = scmp.eq.s32.totalorder %s34, 0
      %p213 = por %p211, %p212
      %s215 = sadd.s32 %s214, 1
      %p218 = scmp.eq.s32.totalorder %s28, 1
      %p219 = scmp.ne.s32.totalorder %s214, %s216
      %p220 = scmp.eq.s32.totalorder %s28, 0
      %p221 = por %p219, %p220
      %p222 = scmp.ne.s32.totalorder %s214, %s216
      %p223 = scmp.eq.s32.totalorder %s33, 1
      %p224 = por %p222, %p223
      %p225 = scmp.ne.s32.totalorder %s216, %s217
      %p226 = scmp.eq.s32.totalorder %s33, 0
      %p227 = por %p225, %p226
      %p228 = scmp.ne.s32.totalorder %s216, %s217
      %p229 = scmp.eq.s32.totalorder %s34, 1
      %p230 = por %p228, %p229
      %p232 = scmp.ne.s32.totalorder %s217, %s231
      %p233 = scmp.eq.s32.totalorder %s34, 0
      %p234 = por %p232, %p233
      %s236 = sadd.s32 %s235, 1
      %p239 = scmp.eq.s32.totalorder %s28, 1
      %p240 = scmp.ne.s32.totalorder %s235, %s237
      %p241 = scmp.eq.s32.totalorder %s28, 0
      %p242 = por %p240, %p241
      %p243 = scmp.ne.s32.totalorder %s235, %s237
      %p244 = scmp.eq.s32.totalorder %s33, 1
      %p245 = por %p243, %p244
      %p246 = scmp.ne.s32.totalorder %s237, %s238
      %p247 = scmp.eq.s32.totalorder %s33, 0
      %p248 = por %p246, %p247
      %p249 = scmp.ne.s32.totalorder %s237, %s238
      %p250 = scmp.eq.s32.totalorder %s34, 1
      %p251 = por %p249, %p250
      %p253 = scmp.ne.s32.totalorder %s238, %s252
      %p254 = scmp.eq.s32.totalorder %s34, 0
      %p255 = por %p253, %p254
      %s257 = sadd.s32 %s256, 1
      %p260 = scmp.eq.s32.totalorder %s28, 1
      %p261 = scmp.ne.s32.totalorder %s256, %s258
      %p262 = scmp.eq.s32.totalorder %s28, 0
      %p263 = por %p261, %p262
      %p264 = scmp.ne.s32.totalorder %s256, %s258
      %p265 = scmp.eq.s32.totalorder %s33, 1
      %p266 = por %p264, %p265
      %p267 = scmp.ne.s32.totalorder %s258, %s259
      %p268 = scmp.eq.s32.totalorder %s33, 0
      %p269 = por %p267, %p268
      %p270 = scmp.ne.s32.totalorder %s258, %s259
      %p271 = scmp.eq.s32.totalorder %s34, 1
      %p272 = por %p270, %p271
      %p274 = scmp.ne.s32.totalorder %s259, %s273
      %p275 = scmp.eq.s32.totalorder %s34, 0
      %p276 = por %p274, %p275
      %s278 = sadd.s32 %s277, 1
      %p281 = scmp.eq.s32.totalorder %s28, 1
      %p282 = scmp.ne.s32.totalorder %s277, %s279
      %p283 = scmp.eq.s32.totalorder %s28, 0
      %p284 = por %p282, %p283
      %p285 = scmp.ne.s32.totalorder %s277, %s279
      %p286 = scmp.eq.s32.totalorder %s33, 1
      %p287 = por %p285, %p286
      %p288 = scmp.ne.s32.totalorder %s279, %s280
      %p289 = scmp.eq.s32.totalorder %s33, 0
      %p290 = por %p288, %p289
      %p291 = scmp.ne.s32.totalorder %s279, %s280
      %p292 = scmp.eq.s32.totalorder %s34, 1
      %p293 = por %p291, %p292
      %p295 = scmp.ne.s32.totalorder %s280, %s294
      %p296 = scmp.eq.s32.totalorder %s34, 0
      %p297 = por %p295, %p296
      %s299 = sadd.s32 %s298, 1
      %p302 = scmp.eq.s32.totalorder %s28, 1
      %p303 = scmp.ne.s32.totalorder %s298, %s300
      %p304 = scmp.eq.s32.totalorder %s28, 0
      %p305 = por %p303, %p304
      %p306 = scmp.ne.s32.totalorder %s298, %s300
      %p307 = scmp.eq.s32.totalorder %s33, 1
      %p308 = por %p306, %p307
      %p309 = scmp.ne.s32.totalorder %s300, %s301
      %p310 = scmp.eq.s32.totalorder %s33, 0
      %p311 = por %p309, %p310
      %p312 = scmp.ne.s32.totalorder %s300, %s301
      %p313 = scmp.eq.s32.totalorder %s34, 1
      %p314 = por %p312, %p313
      %p316 = scmp.ne.s32.totalorder %s301, %s315
      %p317 = scmp.eq.s32.totalorder %s34, 0
      %p318 = por %p316, %p317
      %s320 = sadd.s32 %s319, 1
      %p323 = scmp.eq.s32.totalorder %s28, 1
      %p324 = scmp.ne.s32.totalorder %s319, %s321
      %p325 = scmp.eq.s32.totalorder %s28, 0
      %p326 = por %p324, %p325
      %p327 = scmp.ne.s32.totalorder %s319, %s321
      %p328 = scmp.eq.s32.totalorder %s33, 1
      %p329 = por %p327, %p328
      %p330 = scmp.ne.s32.totalorder %s321, %s322
      %p331 = scmp.eq.s32.totalorder %s33, 0
      %p332 = por %p330, %p331
      %p333 = scmp.ne.s32.totalorder %s321, %s322
      %p334 = scmp.eq.s32.totalorder %s34, 1
      %p335 = por %p333, %p334
      %p337 = scmp.ne.s32.totalorder %s322, %s336
      %p338 = scmp.eq.s32.totalorder %s34, 0
      %p339 = por %p337, %p338
      %s341 = sadd.s32 %s340, 1
      %p344 = scmp.eq.s32.totalorder %s28, 1
      %p345 = scmp.ne.s32.totalorder %s340, %s342
      %p346 = scmp.eq.s32.totalorder %s28, 0
      %p347 = por %p345, %p346
      %p348 = scmp.ne.s32.totalorder %s340, %s342
      %p349 = scmp.eq.s32.totalorder %s33, 1
      %p350 = por %p348, %p349
      %p351 = scmp.ne.s32.totalorder %s342, %s343
      %p352 = scmp.eq.s32.totalorder %s33, 0
      %p353 = por %p351, %p352
      %p354 = scmp.ne.s32.totalorder %s342, %s343
      %p355 = scmp.eq.s32.totalorder %s34, 1
      %p356 = por %p354, %p355
      %p358 = scmp.ne.s32.totalorder %s343, %s357
      %p359 = scmp.eq.s32.totalorder %s34, 0
      %p360 = por %p358, %p359
      %s362 = sadd.s32 %s361, 1
      %p365 = scmp.eq.s32.totalorder %s28, 1
      %p366 = scmp.ne.s32.totalorder %s361, %s363
      %p367 = scmp.eq.s32.totalorder %s28, 0
      %p368 = por %p366, %p367
      %p369 = scmp.ne.s32.totalorder %s361, %s363
      %p370 = scmp.eq.s32.totalorder %s33, 1
      %p371 = por %p369, %p370
      %p372 = scmp.ne.s32.totalorder %s363, %s364
      %p373 = scmp.eq.s32.totalorder %s33, 0
      %p374 = por %p372, %p373
      %p375 = scmp.ne.s32.totalorder %s363, %s364
      %p376 = scmp.eq.s32.totalorder %s34, 1
      %p377 = por %p375, %p376
      %p379 = scmp.ne.s32.totalorder %s364, %s378
      %p380 = scmp.eq.s32.totalorder %s34, 0
      %p381 = por %p379, %p380
      %s383 = sadd.s32 %s382, 1
      %p386 = scmp.eq.s32.totalorder %s28, 1
      %p387 = scmp.ne.s32.totalorder %s382, %s384
      %p388 = scmp.eq.s32.totalorder %s28, 0
      %p389 = por %p387, %p388
      %p390 = scmp.ne.s32.totalorder %s382, %s384
      %p391 = scmp.eq.s32.totalorder %s33, 1
      %p392 = por %p390, %p391
      %p393 = scmp.ne.s32.totalorder %s384, %s385
      %p394 = scmp.eq.s32.totalorder %s33, 0
      %p395 = por %p393, %p394
      %p396 = scmp.ne.s32.totalorder %s384, %s385
      %p397 = scmp.eq.s32.totalorder %s34, 1
      %p398 = por %p396, %p397
      %p400 = scmp.ne.s32.totalorder %s385, %s399
      %p401 = scmp.eq.s32.totalorder %s34, 0
      %p402 = por %p400, %p401
      %s403 = ssub.s32 %s28, %s35
      %p404 = scmp.eq.s32.totalorder %s403, 0
      %s406 = sadd.s32 %s405, 1
      %s407 = scalar_select %p404, %s405, %s406
      %p410 = pneg %p404
      %p411 = scmp.eq.s32.totalorder %s28, 1
      %p412 = por %p410, %p411
      %p413 = scmp.ne.s32.totalorder %s405, %s408
      %p414 = scmp.eq.s32.totalorder %s28, 0
      %p415 = por %p413, %p414
      %p416 = scmp.ne.s32.totalorder %s405, %s408
      %p417 = scmp.eq.s32.totalorder %s33, 1
      %p418 = por %p416, %p417
      %p419 = scmp.ne.s32.totalorder %s408, %s409
      %p420 = scmp.eq.s32.totalorder %s33, 0
      %p421 = por %p419, %p420
      %p422 = scmp.ne.s32.totalorder %s408, %s409
      %p423 = scmp.eq.s32.totalorder %s34, 1
      %p424 = por %p422, %p423
      %p426 = scmp.ne.s32.totalorder %s409, %s425
      %p427 = scmp.eq.s32.totalorder %s34, 0
      %p428 = por %p426, %p427
      %p429 = scmp.le.s32.totalorder 1, %s28
      %p430 = scmp.lt.s32.totalorder %s28, 3
      %p431 = pnand %p429, %p430
      %p432 = pneg %p431
      // Predicated region
      $region9: #{tpu_custom_call.1} parent=5 // pred_check
        _
      $region10: #{tpu_custom_call.1} parent=5 // pred_check_branch
        %434 = sbr.rel (%p431) target = $region12
      $region11: #{tpu_custom_call.1} parent=5 // pred_region
        %s435 = ssub.s32 %s28, 1
        // Predicated region
        $region13: #{tpu_custom_call.1} parent=11 // pred_check
          %p436 = pneg %p101
        $region14: #{tpu_custom_call.1} parent=11 // pred_check_branch
          %438 = sbr.rel (%p436) target = $region16
        $region15: #{tpu_custom_call.1} parent=11 // pred_region
          _
        $region16: #{tpu_custom_call.1} parent=11 // pred_fallthru
          _
        // Predicated region
        $region17: #{tpu_custom_call.1} parent=11 // pred_check
          %p439 = pneg %p122
        $region18: #{tpu_custom_call.1} parent=11 // pred_check_branch
          %441 = sbr.rel (%p439) target = $region20
        $region19: #{tpu_custom_call.1} parent=11 // pred_region
          _
        $region20: #{tpu_custom_call.1} parent=11 // pred_fallthru
          _
        // Predicated region
        $region21: #{tpu_custom_call.1} parent=11 // pred_check
          %p442 = pneg %p143
        $region22: #{tpu_custom_call.1} parent=11 // pred_check_branch
          %444 = sbr.rel (%p442) target = $region24
        $region23: #{tpu_custom_call.1} parent=11 // pred_region
          _
        $region24: #{tpu_custom_call.1} parent=11 // pred_fallthru
          _
        // Predicated region
        $region25: #{tpu_custom_call.1} parent=11 // pred_check
          %p445 = pneg %p164
        $region26: #{tpu_custom_call.1} parent=11 // pred_check_branch
          %447 = sbr.rel (%p445) target = $region28
        $region27: #{tpu_custom_call.1} parent=11 // pred_region
          _
        $region28: #{tpu_custom_call.1} parent=11 // pred_fallthru
          _
        // Predicated region
        $region29: #{tpu_custom_call.1} parent=11 // pred_check
          %p448 = pneg %p185
        $region30: #{tpu_custom_call.1} parent=11 // pred_check_branch
          %450 = sbr.rel (%p448) target = $region32
        $region31: #{tpu_custom_call.1} parent=11 // pred_region
          _
        $region32: #{tpu_custom_call.1} parent=11 // pred_fallthru
          _
        // Predicated region
        $region33: #{tpu_custom_call.1} parent=11 // pred_check
          %p451 = pneg %p206
        $region34: #{tpu_custom_call.1} parent=11 // pred_check_branch
          %453 = sbr.rel (%p451) target = $region36
        $region35: #{tpu_custom_call.1} parent=11 // pred_region
          _
        $region36: #{tpu_custom_call.1} parent=11 // pred_fallthru
          _
        // Predicated region
        $region37: #{tpu_custom_call.1} parent=11 // pred_check
          %p454 = pneg %p227
        $region38: #{tpu_custom_call.1} parent=11 // pred_check_branch
          %456 = sbr.rel (%p454) target = $region40
        $region39: #{tpu_custom_call.1} parent=11 // pred_region
          _
        $region40: #{tpu_custom_call.1} parent=11 // pred_fallthru
          _
        // Predicated region
        $region41: #{tpu_custom_call.1} parent=11 // pred_check
          %p457 = pneg %p248
        $region42: #{tpu_custom_call.1} parent=11 // pred_check_branch
          %459 = sbr.rel (%p457) target = $region44
        $region43: #{tpu_custom_call.1} parent=11 // pred_region
          _
        $region44: #{tpu_custom_call.1} parent=11 // pred_fallthru
          _
        // Predicated region
        $region45: #{tpu_custom_call.1} parent=11 // pred_check
          %p460 = pneg %p269
        $region46: #{tpu_custom_call.1} parent=11 // pred_check_branch
          %462 = sbr.rel (%p460) target = $region48
        $region47: #{tpu_custom_call.1} parent=11 // pred_region
          _
        $region48: #{tpu_custom_call.1} parent=11 // pred_fallthru
          _
        // Predicated region
        $region49: #{tpu_custom_call.1} parent=11 // pred_check
          %p463 = pneg %p290
        $region50: #{tpu_custom_call.1} parent=11 // pred_check_branch
          %465 = sbr.rel (%p463) target = $region52
        $region51: #{tpu_custom_call.1} parent=11 // pred_region
          _
        $region52: #{tpu_custom_call.1} parent=11 // pred_fallthru
          _
        // Predicated region
        $region53: #{tpu_custom_call.1} parent=11 // pred_check
          %p466 = pneg %p311
        $region54: #{tpu_custom_call.1} parent=11 // pred_check_branch
          %468 = sbr.rel (%p466) target = $region56
        $region55: #{tpu_custom_call.1} parent=11 // pred_region
          _
        $region56: #{tpu_custom_call.1} parent=11 // pred_fallthru
          _
        // Predicated region
        $region57: #{tpu_custom_call.1} parent=11 // pred_check
          %p469 = pneg %p332
        $region58: #{tpu_custom_call.1} parent=11 // pred_check_branch
          %471 = sbr.rel (%p469) target = $region60
        $region59: #{tpu_custom_call.1} parent=11 // pred_region
          _
        $region60: #{tpu_custom_call.1} parent=11 // pred_fallthru
          _
        // Predicated region
        $region61: #{tpu_custom_call.1} parent=11 // pred_check
          %p472 = pneg %p353
        $region62: #{tpu_custom_call.1} parent=11 // pred_check_branch
          %474 = sbr.rel (%p472) target = $region64
        $region63: #{tpu_custom_call.1} parent=11 // pred_region
          _
        $region64: #{tpu_custom_call.1} parent=11 // pred_fallthru
          _
        // Predicated region
        $region65: #{tpu_custom_call.1} parent=11 // pred_check
          %p475 = pneg %p374
        $region66: #{tpu_custom_call.1} parent=11 // pred_check_branch
          %477 = sbr.rel (%p475) target = $region68
        $region67: #{tpu_custom_call.1} parent=11 // pred_region
          _
        $region68: #{tpu_custom_call.1} parent=11 // pred_fallthru
          _
        // Predicated region
        $region69: #{tpu_custom_call.1} parent=11 // pred_check
          %p478 = pneg %p395
        $region70: #{tpu_custom_call.1} parent=11 // pred_check_branch
          %480 = sbr.rel (%p478) target = $region72
        $region71: #{tpu_custom_call.1} parent=11 // pred_region
          _
        $region72: #{tpu_custom_call.1} parent=11 // pred_fallthru
          _
      $region12: #{tpu_custom_call.1} parent=5 // pred_fallthru
        _
      %p481 = scmp.lt.s32.totalorder %s28, 2
      // Predicated region
      $region73: #{tpu_custom_call.1} parent=5 // pred_check
        %p482 = pneg %p481
      $region74: #{tpu_custom_call.1} parent=5 // pred_check_branch
        %484 = sbr.rel (%p482) target = $region76
      $region75: #{tpu_custom_call.1} parent=5 // pred_region
        // Predicated region
        $region77: #{tpu_custom_call.1} parent=75 // pred_check
          %p485 = pneg %p48
        $region78: #{tpu_custom_call.1} parent=75 // pred_check_branch
          %487 = sbr.rel (%p485) target = $region80
        $region79: #{tpu_custom_call.1} parent=75 // pred_region
          %s488 = smul.u32 16, %s28
          %p489 = scmp.lt.s32.totalorder %s488, 31
          %s490 = scalar_select %p489, %s488, 31
          %s491 = smul.addr %s490, 4
          %s492 = scalar_lea.vmem %s0, %s491
          %s493 = smul.u32 16, %s28
        $region80: #{tpu_custom_call.1} parent=75 // pred_fallthru
          _
        // Predicated region
        $region81: #{tpu_custom_call.1} parent=75 // pred_check
          %p494 = pneg %p74
        $region82: #{tpu_custom_call.1} parent=75 // pred_check_branch
          %496 = sbr.rel (%p494) target = $region84
        $region83: #{tpu_custom_call.1} parent=75 // pred_region
          %s497 = smul.u32 16, %s28
          %p498 = scmp.lt.s32.totalorder %s497, 31
          %s499 = scalar_select %p498, %s497, 31
          %s500 = smul.addr %s499, 2
          %s501 = smul.addr %s500, 4
          %s502 = scalar_lea.vmem %s1, %s501
          %s503 = smul.u32 16, %s28
        $region84: #{tpu_custom_call.1} parent=75 // pred_fallthru
          _
      $region76: #{tpu_custom_call.1} parent=5 // pred_fallthru
        _
      %p504 = scmp.le.s32.totalorder 1, %s28
      %p505 = scmp.lt.s32.totalorder %s28, 3
      %p506 = pnand %p504, %p505
      %p507 = pneg %p506
      // Predicated region
      $region85: #{tpu_custom_call.1} parent=5 // pred_check
        _
      $region86: #{tpu_custom_call.1} parent=5 // pred_check_branch
        %509 = sbr.rel (%p506) target = $region88
      $region87: #{tpu_custom_call.1} parent=5 // pred_region
        %s510 = ssub.s32 %s28, 1
        %s511 = smul.u32 16, %s33
        %p512 = scmp.lt.s32.totalorder %s511, 31
        %s513 = scalar_select %p512, %s511, 31
        %s514 = smul.addr %s513, 4
        %s515 = scalar_lea.vmem %s0, %s514
        %p516 = pneg %p54
        %p517 = pneg %p51
        %s518 = smul.u32 16, %s33
        %p519 = scmp.lt.s32.totalorder %s518, 31
        %s520 = scalar_select %p519, %s518, 31
        %s521 = smul.addr %s520, 2
        %s522 = smul.addr %s521, 4
        %s523 = scalar_lea.vmem %s1, %s522
        %p524 = pneg %p80
        %p525 = pneg %p77
        %p526 = pneg %p101
        %p527 = pneg %p98
        %p528 = pneg %p122
        %p529 = pneg %p119
        %p530 = pneg %p143
        %p531 = pneg %p140
        %p532 = pneg %p164
        %p533 = pneg %p161
        %p534 = pneg %p185
        %p535 = pneg %p182
        %p536 = pneg %p206
        %p537 = pneg %p203
        %p538 = pneg %p227
        %p539 = pneg %p224
        %p540 = pneg %p248
        %p541 = pneg %p245
        %p542 = pneg %p269
        %p543 = pneg %p266
        %p544 = pneg %p290
        %p545 = pneg %p287
        %p546 = pneg %p311
        %p547 = pneg %p308
        %p548 = pneg %p332
        %p549 = pneg %p329
        %p550 = pneg %p353
        %p551 = pneg %p350
        %p552 = pneg %p374
        %p553 = pneg %p371
        %p554 = pneg %p395
        %p555 = pneg %p392
        %p556 = pneg %p421
        %p557 = pneg %p418
        %s558 = sand.u32 %s408, 1
        %s559 = scalar_lea.sflag [#allocation4], %s558
        %s560 = sand.u32 %s408, 1
        %s561 = smul.addr %s560, 128
        %s562 = scalar_lea.vmem [#allocation3], %s561
        %s563 = smul.u32 16, %s33
        %p564 = scmp.lt.s32.totalorder %s563, 31
        %s565 = scalar_select %p564, %s563, 31
        %s566 = smul.addr %s565, 4
        %s567 = scalar_lea.vmem %s0, %s566
        %s568 = smul.u32 16, %s33
        %s569 = smul.u32 16, %s33
        %p570 = scmp.lt.s32.totalorder %s569, 31
        %s571 = scalar_select %p570, %s569, 31
        %s572 = smul.addr %s571, 2
        %s573 = smul.addr %s572, 4
        %s574 = scalar_lea.vmem %s1, %s573
        %s575 = smul.u32 16, %s33
        %s576 = smul.u32 16, %s33
        %v578 = vld [vmem:[%s567] sm:$0xf]
        %v579 = vld [vmem:[%s567 + $0x4] sm:$0xf]
        %v580 = vld [vmem:[%s567 + $0x8] sm:$0xf]
        %v581 = vld [vmem:[%s567 + $0xc] sm:$0xf]
        %v582 = vld [vmem:[%s567 + $0x10] sm:$0xf]
        %v583 = vld [vmem:[%s567 + $0x14] sm:$0xf]
        %v584 = vld [vmem:[%s567 + $0x18] sm:$0xf]
        %v585 = vld [vmem:[%s567 + $0x1c] sm:$0xf]
        %v586 = vld [vmem:[%s567 + $0x20] sm:$0xf]
        %v587 = vld [vmem:[%s567 + $0x24] sm:$0xf]
        %v588 = vld [vmem:[%s567 + $0x28] sm:$0xf]
        %v589 = vld [vmem:[%s567 + $0x2c] sm:$0xf]
        %v590 = vld [vmem:[%s567 + $0x30] sm:$0xf]
        %v591 = vld [vmem:[%s567 + $0x34] sm:$0xf]
        %v592 = vld [vmem:[%s567 + $0x38] sm:$0xf]
        %v593 = vld [vmem:[%s567 + $0x3c] sm:$0xf]
        %v594 = vld [vmem:[%s2] sm:$0xf]
        %v595 = vld [vmem:[%s3] sm:$0x1]
        %v597 = vlaneseq
        %v598 = vshrl.u32 %v597, 7
        %v599 = vsub.s32 0, %v598
        %v600 = vrot.slane %v595, %v599
        %v618 = vunpack.c.l.b16 %v578
        %v619 = vunpack.c.l.b16 %v579
        %v620 = vunpack.c.l.b16 %v580
        %v621 = vunpack.c.l.b16 %v581
        %v622 = vunpack.c.l.b16 %v582
        %v623 = vunpack.c.l.b16 %v583
        %v624 = vunpack.c.l.b16 %v584
        %v625 = vunpack.c.l.b16 %v585
        %v626 = vunpack.c.l.b16 %v586
        %v627 = vunpack.c.l.b16 %v587
        %v628 = vunpack.c.l.b16 %v588
        %v629 = vunpack.c.l.b16 %v589
        %v630 = vunpack.c.l.b16 %v590
        %v631 = vunpack.c.l.b16 %v591
        %v632 = vunpack.c.l.b16 %v592
        %v633 = vunpack.c.l.b16 %v593
        %v634 = vpack.c.b16 %v619, %v618
        %v635 = vpack.c.b16 %v621, %v620
        %v636 = vpack.c.b16 %v623, %v622
        %v637 = vpack.c.b16 %v625, %v624
        %v638 = vpack.c.b16 %v627, %v626
        %v639 = vpack.c.b16 %v629, %v628
        %v640 = vpack.c.b16 %v631, %v630
        %v641 = vpack.c.b16 %v633, %v632
        %vm642 = vcmask 64512
        %v644 = vsel %vm642, %v634, 0
        %v647 = vsel %vm642, %v635, 0
        %v650 = vsel %vm642, %v636, 0
        %v653 = vsel %vm642, %v637, 0
        %v656 = vsel %vm642, %v638, 0
        %v659 = vsel %vm642, %v639, 0
        %v662 = vsel %vm642, %v640, 0
        %v665 = vsel %vm642, %v641, 0
        %vm667 = vcmask 1043456
        %v669 = vsel %vm667, %v594, 0
        %671 = vmatprep.subr.bf16.mxu0 0
        %672 = vmatpush1.bf16.msra.mxu0 %v669
        %673 = vmatprep.subr.bf16.mxu0 0
        %674 = vmatpush1.bf16.msra.mxu0 0
        %675 = vmatprep.subr.bf16.mxu0 0
        %676 = vmatpush1.bf16.msra.mxu0 0
        %677 = vmatprep.subr.bf16.mxu0 0
        %678 = vmatpush1.bf16.msra.mxu0 0
        %679 = vmatprep.subr.bf16.mxu0 0
        %680 = vmatpush1.bf16.msra.mxu0 0
        %681 = vmatprep.subr.bf16.mxu0 0
        %682 = vmatpush1.bf16.msra.mxu0 0
        %683 = vmatprep.subr.bf16.mxu0 0
        %684 = vmatpush1.bf16.msra.mxu0 0
        %685 = vmatprep.subr.bf16.mxu0 0
        %686 = vmatpush1.bf16.msra.mxu0 0
        %687 = vmatprep.subr.bf16.mxu0 0
        %688 = vmatpush1.bf16.msra.mxu0 0
        %689 = vmatprep.subr.bf16.mxu0 0
        %690 = vmatpush1.bf16.msra.mxu0 0
        %691 = vmatprep.subr.bf16.mxu0 0
        %692 = vmatpush1.bf16.msra.mxu0 0
        %693 = vmatprep.subr.bf16.mxu0 0
        %694 = vmatpush1.bf16.msra.mxu0 0
        %695 = vmatprep.subr.bf16.mxu0 0
        %696 = vmatpush1.bf16.msra.mxu0 0
        %697 = vmatprep.subr.bf16.mxu0 0
        %698 = vmatpush1.bf16.msra.mxu0 0
        %699 = vmatprep.subr.bf16.mxu0 0
        %700 = vmatpush1.bf16.msra.mxu0 0
        %701 = vmatprep.subr.bf16.mxu0 0
        %702 = vmatpush1.bf16.msra.mxu0 0
        %703 = vmatprep.mubr.bf16.mxu0 0
        %704 = vmatmul.mubr.bf16.gmra.mrb[0].mxu0 %v644
        %v705 = vpop.f32.mrb[0].mxu0
        %v706 = vadd.f32 %v600, %v705
        %v707 = vpop.f32.mrb[0].mxu0
        %v708 = vpop.f32.mrb[0].mxu0
        %v709 = vadd.f32 %v600, %v708
        %v710 = vpop.f32.mrb[0].mxu0
        %711 = vmatprep.mubr.bf16.mxu0 0
        %712 = vmatmul.mubr.bf16.gmra.mrb[0].mxu0 %v647
        %v713 = vpop.f32.mrb[0].mxu0
        %v714 = vadd.f32 %v600, %v713
        %v715 = vpop.f32.mrb[0].mxu0
        %v716 = vpop.f32.mrb[0].mxu0
        %v717 = vadd.f32 %v600, %v716
        %v718 = vpop.f32.mrb[0].mxu0
        %719 = vmatprep.mubr.bf16.mxu0 0
        %720 = vmatmul.mubr.bf16.gmra.mrb[0].mxu0 %v650
        %v721 = vpop.f32.mrb[0].mxu0
        %v722 = vadd.f32 %v600, %v721
        %v723 = vpop.f32.mrb[0].mxu0
        %v724 = vpop.f32.mrb[0].mxu0
        %v725 = vadd.f32 %v600, %v724
        %v726 = vpop.f32.mrb[0].mxu0
        %727 = vmatprep.mubr.bf16.mxu0 0
        %728 = vmatmul.mubr.bf16.gmra.mrb[0].mxu0 %v653
        %v729 = vpop.f32.mrb[0].mxu0
        %v730 = vadd.f32 %v600, %v729
        %v731 = vpop.f32.mrb[0].mxu0
        %v732 = vpop.f32.mrb[0].mxu0
        %v733 = vadd.f32 %v600, %v732
        %v734 = vpop.f32.mrb[0].mxu0
        %735 = vmatprep.mubr.bf16.mxu0 0
        %736 = vmatmul.mubr.bf16.gmra.mrb[0].mxu0 %v656
        %v737 = vpop.f32.mrb[0].mxu0
        %v738 = vadd.f32 %v600, %v737
        %v739 = vpop.f32.mrb[0].mxu0
        %v740 = vpop.f32.mrb[0].mxu0
        %v741 = vadd.f32 %v600, %v740
        %v742 = vpop.f32.mrb[0].mxu0
        %743 = vmatprep.mubr.bf16.mxu0 0
        %744 = vmatmul.mubr.bf16.gmra.mrb[0].mxu0 %v659
        %v745 = vpop.f32.mrb[0].mxu0
        %v746 = vadd.f32 %v600, %v745
        %v747 = vpop.f32.mrb[0].mxu0
        %v748 = vpop.f32.mrb[0].mxu0
        %v749 = vadd.f32 %v600, %v748
        %v750 = vpop.f32.mrb[0].mxu0
        %751 = vmatprep.mubr.bf16.mxu0 0
        %752 = vmatmul.mubr.bf16.gmra.mrb[0].mxu0 %v662
        %v753 = vpop.f32.mrb[0].mxu0
        %v754 = vadd.f32 %v600, %v753
        %v755 = vpop.f32.mrb[0].mxu0
        %v756 = vpop.f32.mrb[0].mxu0
        %v757 = vadd.f32 %v600, %v756
        %v758 = vpop.f32.mrb[0].mxu0
        %759 = vmatprep.mubr.bf16.mxu0 0
        %760 = vmatmul.mubr.bf16.gmra.mrb[0].mxu0 %v665
        %v761 = vpop.f32.mrb[0].mxu0
        %v762 = vadd.f32 %v600, %v761
        %v763 = vpop.f32.mrb[0].mxu0
        %v764 = vpop.f32.mrb[0].mxu0
        %v765 = vadd.f32 %v600, %v764
        %v766 = vpop.f32.mrb[0].mxu0
        %767 = vdwg.mxu0
        %vm768 = vcmp.gt.f32.partialorder %v706, 0.0
        %vm769 = vcmp.gt.f32.partialorder %v709, 0.0
        %vm770 = vcmp.gt.f32.partialorder %v714, 0.0
        %vm771 = vcmp.gt.f32.partialorder %v717, 0.0
        %vm772 = vcmp.gt.f32.partialorder %v722, 0.0
        %vm773 = vcmp.gt.f32.partialorder %v725, 0.0
        %vm774 = vcmp.gt.f32.partialorder %v730, 0.0
        %vm775 = vcmp.gt.f32.partialorder %v733, 0.0
        %vm776 = vcmp.gt.f32.partialorder %v738, 0.0
        %vm777 = vcmp.gt.f32.partialorder %v741, 0.0
        %vm778 = vcmp.gt.f32.partialorder %v746, 0.0
        %vm779 = vcmp.gt.f32.partialorder %v749, 0.0
        %vm780 = vcmp.gt.f32.partialorder %v754, 0.0
        %vm781 = vcmp.gt.f32.partialorder %v757, 0.0
        %vm782 = vcmp.gt.f32.partialorder %v762, 0.0
        %vm783 = vcmp.gt.f32.partialorder %v765, 0.0
        %v784 = vmin.f32 %v706, 0.0
        %v785 = vmin.f32 %v709, 0.0
        %v786 = vmin.f32 %v714, 0.0
        %v787 = vmin.f32 %v717, 0.0
        %v788 = vmin.f32 %v722, 0.0
        %v789 = vmin.f32 %v725, 0.0
        %v790 = vmin.f32 %v730, 0.0
        %v791 = vmin.f32 %v733, 0.0
        %v792 = vmin.f32 %v738, 0.0
        %v793 = vmin.f32 %v741, 0.0
        %v794 = vmin.f32 %v746, 0.0
        %v795 = vmin.f32 %v749, 0.0
        %v796 = vmin.f32 %v754, 0.0
        %v797 = vmin.f32 %v757, 0.0
        %v798 = vmin.f32 %v762, 0.0
        %v799 = vmin.f32 %v765, 0.0
        %v800 = vmul.f32 %v784, 1.442695
        %v801 = vpow.pop %v800
        %v802 = vmul.f32 %v785, 1.442695
        %v803 = vpow.pop %v802
        %v804 = vmul.f32 %v786, 1.442695
        %v805 = vpow.pop %v804
        %v806 = vmul.f32 %v787, 1.442695
        %v807 = vpow.pop %v806
        %v808 = vmul.f32 %v788, 1.442695
        %v809 = vpow.pop %v808
        %v810 = vmul.f32 %v789, 1.442695
        %v811 = vpow.pop %v810
        %v812 = vmul.f32 %v790, 1.442695
        %v813 = vpow.pop %v812
        %v814 = vmul.f32 %v791, 1.442695
        %v815 = vpow.pop %v814
        %v816 = vmul.f32 %v792, 1.442695
        %v817 = vpow.pop %v816
        %v818 = vmul.f32 %v793, 1.442695
        %v819 = vpow.pop %v818
        %v820 = vmul.f32 %v794, 1.442695
        %v821 = vpow.pop %v820
        %v822 = vmul.f32 %v795, 1.442695
        %v823 = vpow.pop %v822
        %v824 = vmul.f32 %v796, 1.442695
        %v825 = vpow.pop %v824
        %v826 = vmul.f32 %v797, 1.442695
        %v827 = vpow.pop %v826
        %v828 = vmul.f32 %v798, 1.442695
        %v829 = vpow.pop %v828
        %v830 = vmul.f32 %v799, 1.442695
        %v831 = vpow.pop %v830
        %v832 = vsub.f32 %v801, 1.0
        %v833 = vsub.f32 %v803, 1.0
        %v834 = vsub.f32 %v805, 1.0
        %v835 = vsub.f32 %v807, 1.0
        %v836 = vsub.f32 %v809, 1.0
        %v837 = vsub.f32 %v811, 1.0
        %v838 = vsub.f32 %v813, 1.0
        %v839 = vsub.f32 %v815, 1.0
        %v840 = vsub.f32 %v817, 1.0
        %v841 = vsub.f32 %v819, 1.0
        %v842 = vsub.f32 %v821, 1.0
        %v843 = vsub.f32 %v823, 1.0
        %v844 = vsub.f32 %v825, 1.0
        %v845 = vsub.f32 %v827, 1.0
        %v846 = vsub.f32 %v829, 1.0
        %v847 = vsub.f32 %v831, 1.0
        %v848 = vsel %vm768, %v706, %v832
        %v849 = vsel %vm769, %v709, %v833
        %v850 = vsel %vm770, %v714, %v834
        %v851 = vsel %vm771, %v717, %v835
        %v852 = vsel %vm772, %v722, %v836
        %v853 = vsel %vm773, %v725, %v837
        %v854 = vsel %vm774, %v730, %v838
        %v855 = vsel %vm775, %v733, %v839
        %v856 = vsel %vm776, %v738, %v840
        %v857 = vsel %vm777, %v741, %v841
        %v858 = vsel %vm778, %v746, %v842
        %v859 = vsel %vm779, %v749, %v843
        %v860 = vsel %vm780, %v754, %v844
        %v861 = vsel %vm781, %v757, %v845
        %v862 = vsel %vm782, %v762, %v846
        %v863 = vsel %vm783, %v765, %v847
        %v864 = vpack.c.bf16 %v849, %v848
        %v865 = vpack.c.bf16 %v851, %v850
        %v866 = vpack.c.bf16 %v853, %v852
        %v867 = vpack.c.bf16 %v855, %v854
        %v868 = vpack.c.bf16 %v857, %v856
        %v869 = vpack.c.bf16 %v859, %v858
        %v870 = vpack.c.bf16 %v861, %v860
        %v871 = vpack.c.bf16 %v863, %v862
        %v872 = vld [vmem:[%s4] sm:$0xf]
        %v873 = vld [vmem:[%s4 + $0x4] sm:$0xf]
        %v874 = vld [vmem:[%s4 + $0x8] sm:$0xf]
        %v875 = vld [vmem:[%s4 + $0xc] sm:$0xf]
        %v876 = vld [vmem:[%s5] sm:$0x1]
        %v878 = vlaneseq
        %v879 = vshrl.u32 %v878, 7
        %v880 = vsub.s32 0, %v879
        %v881 = vrot.slane %v876, %v880
        %v887 = vunpack.c.l.b16 %v872
        %v888 = vunpack.c.l.b16 %v873
        %v889 = vunpack.c.l.b16 %v874
        %v890 = vunpack.c.l.b16 %v875
        %v891 = vpack.c.b16 %v888, %v887
        %v892 = vpack.c.b16 %v890, %v889
        %vm895 = vcmask 261120
        %v897 = vsel %vm895, %v864, 0
        %v900 = vsel %vm895, %v865, 0
        %v903 = vsel %vm895, %v866, 0
        %v906 = vsel %vm895, %v867, 0
        %v909 = vsel %vm895, %v868, 0
        %v912 = vsel %vm895, %v869, 0
        %v915 = vsel %vm895, %v870, 0
        %v918 = vsel %vm895, %v871, 0
        %920 = vmatprep.subr.bf16.mxu0 0
        %921 = vmatpush1.bf16.msra.mxu0 %v891
        %922 = vmatprep.subr.bf16.mxu0 0
        %923 = vmatpush1.bf16.msra.mxu0 %v892
        %924 = vmatprep.subr.bf16.mxu0 0
        %925 = vmatpush1.bf16.msra.mxu0 0
        %926 = vmatprep.subr.bf16.mxu0 0
        %927 = vmatpush1.bf16.msra.mxu0 0
        %928 = vmatprep.subr.bf16.mxu0 0
        %929 = vmatpush1.bf16.msra.mxu0 0
        %930 = vmatprep.subr.bf16.mxu0 0
        %931 = vmatpush1.bf16.msra.mxu0 0
        %932 = vmatprep.subr.bf16.mxu0 0
        %933 = vmatpush1.bf16.msra.mxu0 0
        %934 = vmatprep.subr.bf16.mxu0 0
        %935 = vmatpush1.bf16.msra.mxu0 0
        %936 = vmatprep.subr.bf16.mxu0 0
        %937 = vmatpush1.bf16.msra.mxu0 0
        %938 = vmatprep.subr.bf16.mxu0 0
        %939 = vmatpush1.bf16.msra.mxu0 0
        %940 = vmatprep.subr.bf16.mxu0 0
        %941 = vmatpush1.bf16.msra.mxu0 0
        %942 = vmatprep.subr.bf16.mxu0 0
        %943 = vmatpush1.bf16.msra.mxu0 0
        %944 = vmatprep.subr.bf16.mxu0 0
        %945 = vmatpush1.bf16.msra.mxu0 0
        %946 = vmatprep.subr.bf16.mxu0 0
        %947 = vmatpush1.bf16.msra.mxu0 0
        %948 = vmatprep.subr.bf16.mxu0 0
        %949 = vmatpush1.bf16.msra.mxu0 0
        %950 = vmatprep.subr.bf16.mxu0 0
        %951 = vmatpush1.bf16.msra.mxu0 0
        %952 = vmatprep.mubr.bf16.mxu0 0
        %953 = vmatmul.mubr.bf16.gmra.mrb[0].mxu0 %v897
        %v954 = vpop.f32.mrb[0].mxu0
        %v955 = vadd.f32 %v881, %v954
        %v956 = vpop.f32.mrb[0].mxu0
        %v957 = vpop.f32.mrb[0].mxu0
        %v958 = vadd.f32 %v881, %v957
        %v959 = vpop.f32.mrb[0].mxu0
        %960 = vmatprep.mubr.bf16.mxu0 0
        %961 = vmatmul.mubr.bf16.gmra.mrb[0].mxu0 %v900
        %v962 = vpop.f32.mrb[0].mxu0
        %v963 = vadd.f32 %v881, %v962
        %v964 = vpop.f32.mrb[0].mxu0
        %v965 = vpop.f32.mrb[0].mxu0
        %v966 = vadd.f32 %v881, %v965
        %v967 = vpop.f32.mrb[0].mxu0
        %968 = vmatprep.mubr.bf16.mxu0 0
        %969 = vmatmul.mubr.bf16.gmra.mrb[0].mxu0 %v903
        %v970 = vpop.f32.mrb[0].mxu0
        %v971 = vadd.f32 %v881, %v970
        %v972 = vpop.f32.mrb[0].mxu0
        %v973 = vpop.f32.mrb[0].mxu0
        %v974 = vadd.f32 %v881, %v973
        %v975 = vpop.f32.mrb[0].mxu0
        %976 = vmatprep.mubr.bf16.mxu0 0
        %977 = vmatmul.mubr.bf16.gmra.mrb[0].mxu0 %v906
        %v978 = vpop.f32.mrb[0].mxu0
        %v979 = vadd.f32 %v881, %v978
        %v980 = vpop.f32.mrb[0].mxu0
        %v981 = vpop.f32.mrb[0].mxu0
        %v982 = vadd.f32 %v881, %v981
        %v983 = vpop.f32.mrb[0].mxu0
        %984 = vmatprep.mubr.bf16.mxu0 0
        %985 = vmatmul.mubr.bf16.gmra.mrb[0].mxu0 %v909
        %v986 = vpop.f32.mrb[0].mxu0
        %v987 = vadd.f32 %v881, %v986
        %v988 = vpop.f32.mrb[0].mxu0
        %v989 = vpop.f32.mrb[0].mxu0
        %v990 = vadd.f32 %v881, %v989
        %v991 = vpop.f32.mrb[0].mxu0
        %992 = vmatprep.mubr.bf16.mxu0 0
        %993 = vmatmul.mubr.bf16.gmra.mrb[0].mxu0 %v912
        %v994 = vpop.f32.mrb[0].mxu0
        %v995 = vadd.f32 %v881, %v994
        %v996 = vpop.f32.mrb[0].mxu0
        %v997 = vpop.f32.mrb[0].mxu0
        %v998 = vadd.f32 %v881, %v997
        %v999 = vpop.f32.mrb[0].mxu0
        %1000 = vmatprep.mubr.bf16.mxu0 0
        %1001 = vmatmul.mubr.bf16.gmra.mrb[0].mxu0 %v915
        %v1002 = vpop.f32.mrb[0].mxu0
        %v1003 = vadd.f32 %v881, %v1002
        %v1004 = vpop.f32.mrb[0].mxu0
        %v1005 = vpop.f32.mrb[0].mxu0
        %v1006 = vadd.f32 %v881, %v1005
        %v1007 = vpop.f32.mrb[0].mxu0
        %1008 = vmatprep.mubr.bf16.mxu0 0
        %1009 = vmatmul.mubr.bf16.gmra.mrb[0].mxu0 %v918
        %v1010 = vpop.f32.mrb[0].mxu0
        %v1011 = vadd.f32 %v881, %v1010
        %v1012 = vpop.f32.mrb[0].mxu0
        %v1013 = vpop.f32.mrb[0].mxu0
        %v1014 = vadd.f32 %v881, %v1013
        %v1015 = vpop.f32.mrb[0].mxu0
        %1016 = vdwg.mxu0
        %vm1017 = vcmp.gt.f32.partialorder %v955, 0.0
        %vm1018 = vcmp.gt.f32.partialorder %v958, 0.0
        %vm1019 = vcmp.gt.f32.partialorder %v963, 0.0
        %vm1020 = vcmp.gt.f32.partialorder %v966, 0.0
        %vm1021 = vcmp.gt.f32.partialorder %v971, 0.0
        %vm1022 = vcmp.gt.f32.partialorder %v974, 0.0
        %vm1023 = vcmp.gt.f32.partialorder %v979, 0.0
        %vm1024 = vcmp.gt.f32.partialorder %v982, 0.0
        %vm1025 = vcmp.gt.f32.partialorder %v987, 0.0
        %vm1026 = vcmp.gt.f32.partialorder %v990, 0.0
        %vm1027 = vcmp.gt.f32.partialorder %v995, 0.0
        %vm1028 = vcmp.gt.f32.partialorder %v998, 0.0
        %vm1029 = vcmp.gt.f32.partialorder %v1003, 0.0
        %vm1030 = vcmp.gt.f32.partialorder %v1006, 0.0
        %vm1031 = vcmp.gt.f32.partialorder %v1011, 0.0
        %vm1032 = vcmp.gt.f32.partialorder %v1014, 0.0
        %v1033 = vmin.f32 %v955, 0.0
        %v1034 = vmin.f32 %v958, 0.0
        %v1035 = vmin.f32 %v963, 0.0
        %v1036 = vmin.f32 %v966, 0.0
        %v1037 = vmin.f32 %v971, 0.0
        %v1038 = vmin.f32 %v974, 0.0
        %v1039 = vmin.f32 %v979, 0.0
        %v1040 = vmin.f32 %v982, 0.0
        %v1041 = vmin.f32 %v987, 0.0
        %v1042 = vmin.f32 %v990, 0.0
        %v1043 = vmin.f32 %v995, 0.0
        %v1044 = vmin.f32 %v998, 0.0
        %v1045 = vmin.f32 %v1003, 0.0
        %v1046 = vmin.f32 %v1006, 0.0
        %v1047 = vmin.f32 %v1011, 0.0
        %v1048 = vmin.f32 %v1014, 0.0
        %v1049 = vmul.f32 %v1033, 1.442695
        %v1050 = vpow.pop %v1049
        %v1051 = vmul.f32 %v1034, 1.442695
        %v1052 = vpow.pop %v1051
        %v1053 = vmul.f32 %v1035, 1.442695
        %v1054 = vpow.pop %v1053
        %v1055 = vmul.f32 %v1036, 1.442695
        %v1056 = vpow.pop %v1055
        %v1057 = vmul.f32 %v1037, 1.442695
        %v1058 = vpow.pop %v1057
        %v1059 = vmul.f32 %v1038, 1.442695
        %v1060 = vpow.pop %v1059
        %v1061 = vmul.f32 %v1039, 1.442695
        %v1062 = vpow.pop %v1061
        %v1063 = vmul.f32 %v1040, 1.442695
        %v1064 = vpow.pop %v1063
        %v1065 = vmul.f32 %v1041, 1.442695
        %v1066 = vpow.pop %v1065
        %v1067 = vmul.f32 %v1042, 1.442695
        %v1068 = vpow.pop %v1067
        %v1069 = vmul.f32 %v1043, 1.442695
        %v1070 = vpow.pop %v1069
        %v1071 = vmul.f32 %v1044, 1.442695
        %v1072 = vpow.pop %v1071
        %v1073 = vmul.f32 %v1045, 1.442695
        %v1074 = vpow.pop %v1073
        %v1075 = vmul.f32 %v1046, 1.442695
        %v1076 = vpow.pop %v1075
        %v1077 = vmul.f32 %v1047, 1.442695
        %v1078 = vpow.pop %v1077
        %v1079 = vmul.f32 %v1048, 1.442695
        %v1080 = vpow.pop %v1079
        %v1081 = vsub.f32 %v1050, 1.0
        %v1082 = vsub.f32 %v1052, 1.0
        %v1083 = vsub.f32 %v1054, 1.0
        %v1084 = vsub.f32 %v1056, 1.0
        %v1085 = vsub.f32 %v1058, 1.0
        %v1086 = vsub.f32 %v1060, 1.0
        %v1087 = vsub.f32 %v1062, 1.0
        %v1088 = vsub.f32 %v1064, 1.0
        %v1089 = vsub.f32 %v1066, 1.0
        %v1090 = vsub.f32 %v1068, 1.0
        %v1091 = vsub.f32 %v1070, 1.0
        %v1092 = vsub.f32 %v1072, 1.0
        %v1093 = vsub.f32 %v1074, 1.0
        %v1094 = vsub.f32 %v1076, 1.0
        %v1095 = vsub.f32 %v1078, 1.0
        %v1096 = vsub.f32 %v1080, 1.0
        %v1097 = vsel %vm1017, %v955, %v1081
        %v1098 = vsel %vm1018, %v958, %v1082
        %v1099 = vsel %vm1019, %v963, %v1083
        %v1100 = vsel %vm1020, %v966, %v1084
        %v1101 = vsel %vm1021, %v971, %v1085
        %v1102 = vsel %vm1022, %v974, %v1086
        %v1103 = vsel %vm1023, %v979, %v1087
        %v1104 = vsel %vm1024, %v982, %v1088
        %v1105 = vsel %vm1025, %v987, %v1089
        %v1106 = vsel %vm1026, %v990, %v1090
        %v1107 = vsel %vm1027, %v995, %v1091
        %v1108 = vsel %vm1028, %v998, %v1092
        %v1109 = vsel %vm1029, %v1003, %v1093
        %v1110 = vsel %vm1030, %v1006, %v1094
        %v1111 = vsel %vm1031, %v1011, %v1095
        %v1112 = vsel %vm1032, %v1014, %v1096
        %v1113 = vld [vmem:[%s574] sm:$0xff]
        %v1114 = vld [vmem:[%s574 + $0x8] sm:$0xff]
        %v1115 = vld [vmem:[%s574 + $0x10] sm:$0xff]
        %v1116 = vld [vmem:[%s574 + $0x18] sm:$0xff]
        %v1117 = vld [vmem:[%s574 + $0x20] sm:$0xff]
        %v1118 = vld [vmem:[%s574 + $0x28] sm:$0xff]
        %v1119 = vld [vmem:[%s574 + $0x30] sm:$0xff]
        %v1120 = vld [vmem:[%s574 + $0x38] sm:$0xff]
        %v1121 = vld [vmem:[%s574 + $0x40] sm:$0xff]
        %v1122 = vld [vmem:[%s574 + $0x48] sm:$0xff]
        %v1123 = vld [vmem:[%s574 + $0x50] sm:$0xff]
        %v1124 = vld [vmem:[%s574 + $0x58] sm:$0xff]
        %v1125 = vld [vmem:[%s574 + $0x60] sm:$0xff]
        %v1126 = vld [vmem:[%s574 + $0x68] sm:$0xff]
        %v1127 = vld [vmem:[%s574 + $0x70] sm:$0xff]
        %v1128 = vld [vmem:[%s574 + $0x78] sm:$0xff]
        %v1129 = vld [vmem:[%s6] sm:$0xf]
        %v1130 = vld [vmem:[%s6 + $0x4] sm:$0xf]
        %v1131 = vld [vmem:[%s6 + $0x8] sm:$0xf]
        %v1132 = vld [vmem:[%s6 + $0xc] sm:$0xf]
        %v1133 = vld [vmem:[%s6 + $0x10] sm:$0xf]
        %v1134 = vld [vmem:[%s6 + $0x14] sm:$0xf]
        %v1135 = vld [vmem:[%s6 + $0x18] sm:$0xf]
        %v1136 = vld [vmem:[%s6 + $0x1c] sm:$0xf]
        %v1137 = vld [vmem:[%s6 + $0x20] sm:$0xf]
        %v1138 = vld [vmem:[%s6 + $0x24] sm:$0xf]
        %v1139 = vld [vmem:[%s6 + $0x28] sm:$0xf]
        %v1140 = vld [vmem:[%s6 + $0x2c] sm:$0xf]
        %v1141 = vld [vmem:[%s6 + $0x30] sm:$0xf]
        %v1142 = vld [vmem:[%s6 + $0x34] sm:$0xf]
        %v1143 = vld [vmem:[%s6 + $0x38] sm:$0xf]
        %v1144 = vld [vmem:[%s6 + $0x3c] sm:$0xf]
        %v1145 = vld [vmem:[%s6 + $0x40] sm:$0xf]
        %v1146 = vld [vmem:[%s6 + $0x44] sm:$0xf]
        %v1147 = vld [vmem:[%s6 + $0x48] sm:$0xf]
        %v1148 = vld [vmem:[%s6 + $0x4c] sm:$0xf]
        %v1149 = vld [vmem:[%s6 + $0x50] sm:$0xf]
        %v1150 = vld [vmem:[%s6 + $0x54] sm:$0xf]
        %v1151 = vld [vmem:[%s6 + $0x58] sm:$0xf]
        %v1152 = vld [vmem:[%s6 + $0x5c] sm:$0xf]
        %v1153 = vld [vmem:[%s6 + $0x60] sm:$0xf]
        %v1154 = vld [vmem:[%s6 + $0x64] sm:$0xf]
        %v1155 = vld [vmem:[%s6 + $0x68] sm:$0xf]
        %v1156 = vld [vmem:[%s6 + $0x6c] sm:$0xf]
        %v1157 = vld [vmem:[%s6 + $0x70] sm:$0xf]
        %v1158 = vld [vmem:[%s6 + $0x74] sm:$0xf]
        %v1159 = vld [vmem:[%s6 + $0x78] sm:$0xf]
        %v1160 = vld [vmem:[%s6 + $0x7c] sm:$0xf]
        %v1161 = vld [vmem:[%s7] sm:$0x1]
        %v1163 = vlaneseq
        %v1164 = vshrl.u32 %v1163, 7
        %v1165 = vsub.s32 0, %v1164
        %v1166 = vrot.slane %v1161, %v1165
        %v1184 = vunpack.c.l.b16 %v1113
        %v1185 = vunpack.c.h.b16 %v1113
        %v1186 = vunpack.c.l.b16 %v1114
        %v1187 = vunpack.c.h.b16 %v1114
        %v1188 = vunpack.c.l.b16 %v1115
        %v1189 = vunpack.c.h.b16 %v1115
        %v1190 = vunpack.c.l.b16 %v1116
        %v1191 = vunpack.c.h.b16 %v1116
        %v1192 = vunpack.c.l.b16 %v1117
        %v1193 = vunpack.c.h.b16 %v1117
        %v1194 = vunpack.c.l.b16 %v1118
        %v1195 = vunpack.c.h.b16 %v1118
        %v1196 = vunpack.c.l.b16 %v1119
        %v1197 = vunpack.c.h.b16 %v1119
        %v1198 = vunpack.c.l.b16 %v1120
        %v1199 = vunpack.c.h.b16 %v1120
        %v1200 = vunpack.c.l.b16 %v1121
        %v1201 = vunpack.c.h.b16 %v1121
        %v1202 = vunpack.c.l.b16 %v1122
        %v1203 = vunpack.c.h.b16 %v1122
        %v1204 = vunpack.c.l.b16 %v1123
        %v1205 = vunpack.c.h.b16 %v1123
        %v1206 = vunpack.c.l.b16 %v1124
        %v1207 = vunpack.c.h.b16 %v1124
        %v1208 = vunpack.c.l.b16 %v1125
        %v1209 = vunpack.c.h.b16 %v1125
        %v1210 = vunpack.c.l.b16 %v1126
        %v1211 = vunpack.c.h.b16 %v1126
        %v1212 = vunpack.c.l.b16 %v1127
        %v1213 = vunpack.c.h.b16 %v1127
        %v1214 = vunpack.c.l.b16 %v1128
        %v1215 = vunpack.c.h.b16 %v1128
        %v1216 = vpack.c.b16 %v1186, %v1184
        %v1217 = vpack.c.b16 %v1187, %v1185
        %v1218 = vpack.c.b16 %v1190, %v1188
        %v1219 = vpack.c.b16 %v1191, %v1189
        %v1220 = vpack.c.b16 %v1194, %v1192
        %v1221 = vpack.c.b16 %v1195, %v1193
        %v1222 = vpack.c.b16 %v1198, %v1196
        %v1223 = vpack.c.b16 %v1199, %v1197
        %v1224 = vpack.c.b16 %v1202, %v1200
        %v1225 = vpack.c.b16 %v1203, %v1201
        %v1226 = vpack.c.b16 %v1206, %v1204
        %v1227 = vpack.c.b16 %v1207, %v1205
        %v1228 = vpack.c.b16 %v1210, %v1208
        %v1229 = vpack.c.b16 %v1211, %v1209
        %v1230 = vpack.c.b16 %v1214, %v1212
        %v1231 = vpack.c.b16 %v1215, %v1213
        %v1280 = vunpack.c.l.b16 %v1129
        %v1281 = vunpack.c.l.b16 %v1130
        %v1282 = vunpack.c.l.b16 %v1131
        %v1283 = vunpack.c.l.b16 %v1132
        %v1284 = vunpack.c.l.b16 %v1133
        %v1285 = vunpack.c.l.b16 %v1134
        %v1286 = vunpack.c.l.b16 %v1135
        %v1287 = vunpack.c.l.b16 %v1136
        %v1288 = vunpack.c.l.b16 %v1137
        %v1289 = vunpack.c.l.b16 %v1138
        %v1290 = vunpack.c.l.b16 %v1139
        %v1291 = vunpack.c.l.b16 %v1140
        %v1292 = vunpack.c.l.b16 %v1141
        %v1293 = vunpack.c.l.b16 %v1142
        %v1294 = vunpack.c.l.b16 %v1143
        %v1295 = vunpack.c.l.b16 %v1144
        %v1296 = vunpack.c.l.b16 %v1145
        %v1297 = vunpack.c.l.b16 %v1146
        %v1298 = vunpack.c.l.b16 %v1147
        %v1299 = vunpack.c.l.b16 %v1148
        %v1300 = vunpack.c.l.b16 %v1149
        %v1301 = vunpack.c.l.b16 %v1150
        %v1302 = vunpack.c.l.b16 %v1151
        %v1303 = vunpack.c.l.b16 %v1152
        %v1304 = vunpack.c.l.b16 %v1153
        %v1305 = vunpack.c.l.b16 %v1154
        %v1306 = vunpack.c.l.b16 %v1155
        %v1307 = vunpack.c.l.b16 %v1156
        %v1308 = vunpack.c.l.b16 %v1157
        %v1309 = vunpack.c.l.b16 %v1158
        %v1310 = vunpack.c.l.b16 %v1159
        %v1311 = vunpack.c.l.b16 %v1160
        %v1312 = vpack.c.b16 %v1281, %v1280
        %v1313 = vpack.c.b16 %v1283, %v1282
        %v1314 = vpack.c.b16 %v1285, %v1284
        %v1315 = vpack.c.b16 %v1287, %v1286
        %v1316 = vpack.c.b16 %v1289, %v1288
        %v1317 = vpack.c.b16 %v1291, %v1290
        %v1318 = vpack.c.b16 %v1293, %v1292
        %v1319 = vpack.c.b16 %v1295, %v1294
        %v1320 = vpack.c.b16 %v1297, %v1296
        %v1321 = vpack.c.b16 %v1299, %v1298
        %v1322 = vpack.c.b16 %v1301, %v1300
        %v1323 = vpack.c.b16 %v1303, %v1302
        %v1324 = vpack.c.b16 %v1305, %v1304
        %v1325 = vpack.c.b16 %v1307, %v1306
        %v1326 = vpack.c.b16 %v1309, %v1308
        %v1327 = vpack.c.b16 %v1311, %v1310
        %1344 = vmatprep.subr.bf16.mxu0 0
        %1345 = vmatpush1.bf16.msra.mxu0 %v1312
        %1346 = vmatprep.subr.bf16.mxu0 0
        %1347 = vmatpush1.bf16.msra.mxu0 %v1313
        %1348 = vmatprep.subr.bf16.mxu0 0
        %1349 = vmatpush1.bf16.msra.mxu0 %v1314
        %1350 = vmatprep.subr.bf16.mxu0 0
        %1351 = vmatpush1.bf16.msra.mxu0 %v1315
        %1352 = vmatprep.subr.bf16.mxu0 0
        %1353 = vmatpush1.bf16.msra.mxu0 %v1316
        %1354 = vmatprep.subr.bf16.mxu0 0
        %1355 = vmatpush1.bf16.msra.mxu0 %v1317
        %1356 = vmatprep.subr.bf16.mxu0 0
        %1357 = vmatpush1.bf16.msra.mxu0 %v1318
        %1358 = vmatprep.subr.bf16.mxu0 0
        %1359 = vmatpush1.bf16.msra.mxu0 %v1319
        %1360 = vmatprep.subr.bf16.mxu0 0
        %1361 = vmatpush1.bf16.msra.mxu0 %v1320
        %1362 = vmatprep.subr.bf16.mxu0 0
        %1363 = vmatpush1.bf16.msra.mxu0 %v1321
        %1364 = vmatprep.subr.bf16.mxu0 0
        %1365 = vmatpush1.bf16.msra.mxu0 %v1322
        %1366 = vmatprep.subr.bf16.mxu0 0
        %1367 = vmatpush1.bf16.msra.mxu0 %v1323
        %1368 = vmatprep.subr.bf16.mxu0 0
        %1369 = vmatpush1.bf16.msra.mxu0 %v1324
        %1370 = vmatprep.subr.bf16.mxu0 0
        %1371 = vmatpush1.bf16.msra.mxu0 %v1325
        %1372 = vmatprep.subr.bf16.mxu0 0
        %1373 = vmatpush1.bf16.msra.mxu0 %v1326
        %1374 = vmatprep.subr.bf16.mxu0 0
        %1375 = vmatpush1.bf16.msra.mxu0 %v1327
        %1376 = vmatprep.mubr.bf16.mxu0 %v1217
        %1377 = vmatmul.mubr.bf16.gmra.mrb[0].mxu0 %v1216
        %v1378 = vpop.f32.mrb[0].mxu0
        %v1379 = vadd.f32 %v1166, %v1378
        %v1380 = vpop.f32.mrb[0].mxu0
        %v1381 = vpop.f32.mrb[0].mxu0
        %v1382 = vadd.f32 %v1166, %v1381
        %v1383 = vpop.f32.mrb[0].mxu0
        %1384 = vmatprep.mubr.bf16.mxu0 %v1219
        %1385 = vmatmul.mubr.bf16.gmra.mrb[0].mxu0 %v1218
        %v1386 = vpop.f32.mrb[0].mxu0
        %v1387 = vadd.f32 %v1166, %v1386
        %v1388 = vpop.f32.mrb[0].mxu0
        %v1389 = vpop.f32.mrb[0].mxu0
        %v1390 = vadd.f32 %v1166, %v1389
        %v1391 = vpop.f32.mrb[0].mxu0
        %1392 = vmatprep.mubr.bf16.mxu0 %v1221
        %1393 = vmatmul.mubr.bf16.gmra.mrb[0].mxu0 %v1220
        %v1394 = vpop.f32.mrb[0].mxu0
        %v1395 = vadd.f32 %v1166, %v1394
        %v1396 = vpop.f32.mrb[0].mxu0
        %v1397 = vpop.f32.mrb[0].mxu0
        %v1398 = vadd.f32 %v1166, %v1397
        %v1399 = vpop.f32.mrb[0].mxu0
        %1400 = vmatprep.mubr.bf16.mxu0 %v1223
        %1401 = vmatmul.mubr.bf16.gmra.mrb[0].mxu0 %v1222
        %v1402 = vpop.f32.mrb[0].mxu0
        %v1403 = vadd.f32 %v1166, %v1402
        %v1404 = vpop.f32.mrb[0].mxu0
        %v1405 = vpop.f32.mrb[0].mxu0
        %v1406 = vadd.f32 %v1166, %v1405
        %v1407 = vpop.f32.mrb[0].mxu0
        %1408 = vmatprep.mubr.bf16.mxu0 %v1225
        %1409 = vmatmul.mubr.bf16.gmra.mrb[0].mxu0 %v1224
        %v1410 = vpop.f32.mrb[0].mxu0
        %v1411 = vadd.f32 %v1166, %v1410
        %v1412 = vpop.f32.mrb[0].mxu0
        %v1413 = vpop.f32.mrb[0].mxu0
        %v1414 = vadd.f32 %v1166, %v1413
        %v1415 = vpop.f32.mrb[0].mxu0
        %1416 = vmatprep.mubr.bf16.mxu0 %v1227
        %1417 = vmatmul.mubr.bf16.gmra.mrb[0].mxu0 %v1226
        %v1418 = vpop.f32.mrb[0].mxu0
        %v1419 = vadd.f32 %v1166, %v1418
        %v1420 = vpop.f32.mrb[0].mxu0
        %v1421 = vpop.f32.mrb[0].mxu0
        %v1422 = vadd.f32 %v1166, %v1421
        %v1423 = vpop.f32.mrb[0].mxu0
        %1424 = vmatprep.mubr.bf16.mxu0 %v1229
        %1425 = vmatmul.mubr.bf16.gmra.mrb[0].mxu0 %v1228
        %v1426 = vpop.f32.mrb[0].mxu0
        %v1427 = vadd.f32 %v1166, %v1426
        %v1428 = vpop.f32.mrb[0].mxu0
        %v1429 = vpop.f32.mrb[0].mxu0
        %v1430 = vadd.f32 %v1166, %v1429
        %v1431 = vpop.f32.mrb[0].mxu0
        %1432 = vmatprep.mubr.bf16.mxu0 %v1231
        %1433 = vmatmul.mubr.bf16.gmra.mrb[0].mxu0 %v1230
        %v1434 = vpop.f32.mrb[0].mxu0
        %v1435 = vadd.f32 %v1166, %v1434
        %v1436 = vpop.f32.mrb[0].mxu0
        %v1437 = vpop.f32.mrb[0].mxu0
        %v1438 = vadd.f32 %v1166, %v1437
        %v1439 = vpop.f32.mrb[0].mxu0
        %1440 = vdwg.mxu0
        %vm1441 = vcmp.gt.f32.partialorder %v1379, 0.0
        %vm1442 = vcmp.gt.f32.partialorder %v1382, 0.0
        %vm1443 = vcmp.gt.f32.partialorder %v1387, 0.0
        %vm1444 = vcmp.gt.f32.partialorder %v1390, 0.0
        %vm1445 = vcmp.gt.f32.partialorder %v1395, 0.0
        %vm1446 = vcmp.gt.f32.partialorder %v1398, 0.0
        %vm1447 = vcmp.gt.f32.partialorder %v1403, 0.0
        %vm1448 = vcmp.gt.f32.partialorder %v1406, 0.0
        %vm1449 = vcmp.gt.f32.partialorder %v1411, 0.0
        %vm1450 = vcmp.gt.f32.partialorder %v1414, 0.0
        %vm1451 = vcmp.gt.f32.partialorder %v1419, 0.0
        %vm1452 = vcmp.gt.f32.partialorder %v1422, 0.0
        %vm1453 = vcmp.gt.f32.partialorder %v1427, 0.0
        %vm1454 = vcmp.gt.f32.partialorder %v1430, 0.0
        %vm1455 = vcmp.gt.f32.partialorder %v1435, 0.0
        %vm1456 = vcmp.gt.f32.partialorder %v1438, 0.0
        %v1457 = vmin.f32 %v1379, 0.0
        %v1458 = vmin.f32 %v1382, 0.0
        %v1459 = vmin.f32 %v1387, 0.0
        %v1460 = vmin.f32 %v1390, 0.0
        %v1461 = vmin.f32 %v1395, 0.0
        %v1462 = vmin.f32 %v1398, 0.0
        %v1463 = vmin.f32 %v1403, 0.0
        %v1464 = vmin.f32 %v1406, 0.0
        %v1465 = vmin.f32 %v1411, 0.0
        %v1466 = vmin.f32 %v1414, 0.0
        %v1467 = vmin.f32 %v1419, 0.0
        %v1468 = vmin.f32 %v1422, 0.0
        %v1469 = vmin.f32 %v1427, 0.0
        %v1470 = vmin.f32 %v1430, 0.0
        %v1471 = vmin.f32 %v1435, 0.0
        %v1472 = vmin.f32 %v1438, 0.0
        %v1473 = vmul.f32 %v1457, 1.442695
        %v1474 = vpow.pop %v1473
        %v1475 = vmul.f32 %v1458, 1.442695
        %v1476 = vpow.pop %v1475
        %v1477 = vmul.f32 %v1459, 1.442695
        %v1478 = vpow.pop %v1477
        %v1479 = vmul.f32 %v1460, 1.442695
        %v1480 = vpow.pop %v1479
        %v1481 = vmul.f32 %v1461, 1.442695
        %v1482 = vpow.pop %v1481
        %v1483 = vmul.f32 %v1462, 1.442695
        %v1484 = vpow.pop %v1483
        %v1485 = vmul.f32 %v1463, 1.442695
        %v1486 = vpow.pop %v1485
        %v1487 = vmul.f32 %v1464, 1.442695
        %v1488 = vpow.pop %v1487
        %v1489 = vmul.f32 %v1465, 1.442695
        %v1490 = vpow.pop %v1489
        %v1491 = vmul.f32 %v1466, 1.442695
        %v1492 = vpow.pop %v1491
        %v1493 = vmul.f32 %v1467, 1.442695
        %v1494 = vpow.pop %v1493
        %v1495 = vmul.f32 %v1468, 1.442695
        %v1496 = vpow.pop %v1495
        %v1497 = vmul.f32 %v1469, 1.442695
        %v1498 = vpow.pop %v1497
        %v1499 = vmul.f32 %v1470, 1.442695
        %v1500 = vpow.pop %v1499
        %v1501 = vmul.f32 %v1471, 1.442695
        %v1502 = vpow.pop %v1501
        %v1503 = vmul.f32 %v1472, 1.442695
        %v1504 = vpow.pop %v1503
        %v1505 = vsub.f32 %v1474, 1.0
        %v1506 = vsub.f32 %v1476, 1.0
        %v1507 = vsub.f32 %v1478, 1.0
        %v1508 = vsub.f32 %v1480, 1.0
        %v1509 = vsub.f32 %v1482, 1.0
        %v1510 = vsub.f32 %v1484, 1.0
        %v1511 = vsub.f32 %v1486, 1.0
        %v1512 = vsub.f32 %v1488, 1.0
        %v1513 = vsub.f32 %v1490, 1.0
        %v1514 = vsub.f32 %v1492, 1.0
        %v1515 = vsub.f32 %v1494, 1.0
        %v1516 = vsub.f32 %v1496, 1.0
        %v1517 = vsub.f32 %v1498, 1.0
        %v1518 = vsub.f32 %v1500, 1.0
        %v1519 = vsub.f32 %v1502, 1.0
        %v1520 = vsub.f32 %v1504, 1.0
        %v1521 = vsel %vm1441, %v1379, %v1505
        %v1522 = vsel %vm1442, %v1382, %v1506
        %v1523 = vsel %vm1443, %v1387, %v1507
        %v1524 = vsel %vm1444, %v1390, %v1508
        %v1525 = vsel %vm1445, %v1395, %v1509
        %v1526 = vsel %vm1446, %v1398, %v1510
        %v1527 = vsel %vm1447, %v1403, %v1511
        %v1528 = vsel %vm1448, %v1406, %v1512
        %v1529 = vsel %vm1449, %v1411, %v1513
        %v1530 = vsel %vm1450, %v1414, %v1514
        %v1531 = vsel %vm1451, %v1419, %v1515
        %v1532 = vsel %vm1452, %v1422, %v1516
        %v1533 = vsel %vm1453, %v1427, %v1517
        %v1534 = vsel %vm1454, %v1430, %v1518
        %v1535 = vsel %vm1455, %v1435, %v1519
        %v1536 = vsel %vm1456, %v1438, %v1520
        %v1537 = vpack.c.bf16 %v1522, %v1521
        %v1538 = vpack.c.bf16 %v1524, %v1523
        %v1539 = vpack.c.bf16 %v1526, %v1525
        %v1540 = vpack.c.bf16 %v1528, %v1527
        %v1541 = vpack.c.bf16 %v1530, %v1529
        %v1542 = vpack.c.bf16 %v1532, %v1531
        %v1543 = vpack.c.bf16 %v1534, %v1533
        %v1544 = vpack.c.bf16 %v1536, %v1535
        %v1545 = vld [vmem:[%s8] sm:$0xf]
        %v1546 = vld [vmem:[%s8 + $0x4] sm:$0xf]
        %v1547 = vld [vmem:[%s8 + $0x8] sm:$0xf]
        %v1548 = vld [vmem:[%s8 + $0xc] sm:$0xf]
        %v1549 = vld [vmem:[%s9] sm:$0x1]
        %v1551 = vlaneseq
        %v1552 = vshrl.u32 %v1551, 7
        %v1553 = vsub.s32 0, %v1552
        %v1554 = vrot.slane %v1549, %v1553
        %v1560 = vunpack.c.l.b16 %v1545
        %v1561 = vunpack.c.l.b16 %v1546
        %v1562 = vunpack.c.l.b16 %v1547
        %v1563 = vunpack.c.l.b16 %v1548
        %v1564 = vpack.c.b16 %v1561, %v1560
        %v1565 = vpack.c.b16 %v1563, %v1562
        %v1569 = vsel %vm895, %v1537, 0
        %v1572 = vsel %vm895, %v1538, 0
        %v1575 = vsel %vm895, %v1539, 0
        %v1578 = vsel %vm895, %v1540, 0
        %v1581 = vsel %vm895, %v1541, 0
        %v1584 = vsel %vm895, %v1542, 0
        %v1587 = vsel %vm895, %v1543, 0
        %v1590 = vsel %vm895, %v1544, 0
        %1592 = vmatprep.subr.bf16.mxu0 0
        %1593 = vmatpush1.bf16.msra.mxu0 %v1564
        %1594 = vmatprep.subr.bf16.mxu0 0
        %1595 = vmatpush1.bf16.msra.mxu0 %v1565
        %1596 = vmatprep.subr.bf16.mxu0 0
        %1597 = vmatpush1.bf16.msra.mxu0 0
        %1598 = vmatprep.subr.bf16.mxu0 0
        %1599 = vmatpush1.bf16.msra.mxu0 0
        %1600 = vmatprep.subr.bf16.mxu0 0
        %1601 = vmatpush1.bf16.msra.mxu0 0
        %1602 = vmatprep.subr.bf16.mxu0 0
        %1603 = vmatpush1.bf16.msra.mxu0 0
        %1604 = vmatprep.subr.bf16.mxu0 0
        %1605 = vmatpush1.bf16.msra.mxu0 0
        %1606 = vmatprep.subr.bf16.mxu0 0
        %1607 = vmatpush1.bf16.msra.mxu0 0
        %1608 = vmatprep.subr.bf16.mxu0 0
        %1609 = vmatpush1.bf16.msra.mxu0 0
        %1610 = vmatprep.subr.bf16.mxu0 0
        %1611 = vmatpush1.bf16.msra.mxu0 0
        %1612 = vmatprep.subr.bf16.mxu0 0
        %1613 = vmatpush1.bf16.msra.mxu0 0
        %1614 = vmatprep.subr.bf16.mxu0 0
        %1615 = vmatpush1.bf16.msra.mxu0 0
        %1616 = vmatprep.subr.bf16.mxu0 0
        %1617 = vmatpush1.bf16.msra.mxu0 0
        %1618 = vmatprep.subr.bf16.mxu0 0
        %1619 = vmatpush1.bf16.msra.mxu0 0
        %1620 = vmatprep.subr.bf16.mxu0 0
        %1621 = vmatpush1.bf16.msra.mxu0 0
        %1622 = vmatprep.subr.bf16.mxu0 0
        %1623 = vmatpush1.bf16.msra.mxu0 0
        %1624 = vmatprep.mubr.bf16.mxu0 0
        %1625 = vmatmul.mubr.bf16.gmra.mrb[0].mxu0 %v1569
        %v1626 = vpop.f32.mrb[0].mxu0
        %v1627 = vadd.f32 %v1554, %v1626
        %v1628 = vpop.f32.mrb[0].mxu0
        %v1629 = vpop.f32.mrb[0].mxu0
        %v1630 = vadd.f32 %v1554, %v1629
        %v1631 = vpop.f32.mrb[0].mxu0
        %1632 = vmatprep.mubr.bf16.mxu0 0
        %1633 = vmatmul.mubr.bf16.gmra.mrb[0].mxu0 %v1572
        %v1634 = vpop.f32.mrb[0].mxu0
        %v1635 = vadd.f32 %v1554, %v1634
        %v1636 = vpop.f32.mrb[0].mxu0
        %v1637 = vpop.f32.mrb[0].mxu0
        %v1638 = vadd.f32 %v1554, %v1637
        %v1639 = vpop.f32.mrb[0].mxu0
        %1640 = vmatprep.mubr.bf16.mxu0 0
        %1641 = vmatmul.mubr.bf16.gmra.mrb[0].mxu0 %v1575
        %v1642 = vpop.f32.mrb[0].mxu0
        %v1643 = vadd.f32 %v1554, %v1642
        %v1644 = vpop.f32.mrb[0].mxu0
        %v1645 = vpop.f32.mrb[0].mxu0
        %v1646 = vadd.f32 %v1554, %v1645
        %v1647 = vpop.f32.mrb[0].mxu0
        %1648 = vmatprep.mubr.bf16.mxu0 0
        %1649 = vmatmul.mubr.bf16.gmra.mrb[0].mxu0 %v1578
        %v1650 = vpop.f32.mrb[0].mxu0
        %v1651 = vadd.f32 %v1554, %v1650
        %v1652 = vpop.f32.mrb[0].mxu0
        %v1653 = vpop.f32.mrb[0].mxu0
        %v1654 = vadd.f32 %v1554, %v1653
        %v1655 = vpop.f32.mrb[0].mxu0
        %1656 = vmatprep.mubr.bf16.mxu0 0
        %1657 = vmatmul.mubr.bf16.gmra.mrb[0].mxu0 %v1581
        %v1658 = vpop.f32.mrb[0].mxu0
        %v1659 = vadd.f32 %v1554, %v1658
        %v1660 = vpop.f32.mrb[0].mxu0
        %v1661 = vpop.f32.mrb[0].mxu0
        %v1662 = vadd.f32 %v1554, %v1661
        %v1663 = vpop.f32.mrb[0].mxu0
        %1664 = vmatprep.mubr.bf16.mxu0 0
        %1665 = vmatmul.mubr.bf16.gmra.mrb[0].mxu0 %v1584
        %v1666 = vpop.f32.mrb[0].mxu0
        %v1667 = vadd.f32 %v1554, %v1666
        %v1668 = vpop.f32.mrb[0].mxu0
        %v1669 = vpop.f32.mrb[0].mxu0
        %v1670 = vadd.f32 %v1554, %v1669
        %v1671 = vpop.f32.mrb[0].mxu0
        %1672 = vmatprep.mubr.bf16.mxu0 0
        %1673 = vmatmul.mubr.bf16.gmra.mrb[0].mxu0 %v1587
        %v1674 = vpop.f32.mrb[0].mxu0
        %v1675 = vadd.f32 %v1554, %v1674
        %v1676 = vpop.f32.mrb[0].mxu0
        %v1677 = vpop.f32.mrb[0].mxu0
        %v1678 = vadd.f32 %v1554, %v1677
        %v1679 = vpop.f32.mrb[0].mxu0
        %1680 = vmatprep.mubr.bf16.mxu0 0
        %1681 = vmatmul.mubr.bf16.gmra.mrb[0].mxu0 %v1590
        %v1682 = vpop.f32.mrb[0].mxu0
        %v1683 = vadd.f32 %v1554, %v1682
        %v1684 = vpop.f32.mrb[0].mxu0
        %v1685 = vpop.f32.mrb[0].mxu0
        %v1686 = vadd.f32 %v1554, %v1685
        %v1687 = vpop.f32.mrb[0].mxu0
        %1688 = vdwg.mxu0
        %vm1689 = vcmp.gt.f32.partialorder %v1627, 0.0
        %vm1690 = vcmp.gt.f32.partialorder %v1630, 0.0
        %vm1691 = vcmp.gt.f32.partialorder %v1635, 0.0
        %vm1692 = vcmp.gt.f32.partialorder %v1638, 0.0
        %vm1693 = vcmp.gt.f32.partialorder %v1643, 0.0
        %vm1694 = vcmp.gt.f32.partialorder %v1646, 0.0
        %vm1695 = vcmp.gt.f32.partialorder %v1651, 0.0
        %vm1696 = vcmp.gt.f32.partialorder %v1654, 0.0
        %vm1697 = vcmp.gt.f32.partialorder %v1659, 0.0
        %vm1698 = vcmp.gt.f32.partialorder %v1662, 0.0
        %vm1699 = vcmp.gt.f32.partialorder %v1667, 0.0
        %vm1700 = vcmp.gt.f32.partialorder %v1670, 0.0
        %vm1701 = vcmp.gt.f32.partialorder %v1675, 0.0
        %vm1702 = vcmp.gt.f32.partialorder %v1678, 0.0
        %vm1703 = vcmp.gt.f32.partialorder %v1683, 0.0
        %vm1704 = vcmp.gt.f32.partialorder %v1686, 0.0
        %v1705 = vmin.f32 %v1627, 0.0
        %v1706 = vmin.f32 %v1630, 0.0
        %v1707 = vmin.f32 %v1635, 0.0
        %v1708 = vmin.f32 %v1638, 0.0
        %v1709 = vmin.f32 %v1643, 0.0
        %v1710 = vmin.f32 %v1646, 0.0
        %v1711 = vmin.f32 %v1651, 0.0
        %v1712 = vmin.f32 %v1654, 0.0
        %v1713 = vmin.f32 %v1659, 0.0
        %v1714 = vmin.f32 %v1662, 0.0
        %v1715 = vmin.f32 %v1667, 0.0
        %v1716 = vmin.f32 %v1670, 0.0
        %v1717 = vmin.f32 %v1675, 0.0
        %v1718 = vmin.f32 %v1678, 0.0
        %v1719 = vmin.f32 %v1683, 0.0
        %v1720 = vmin.f32 %v1686, 0.0
        %v1721 = vmul.f32 %v1705, 1.442695
        %v1722 = vpow.pop %v1721
        %v1723 = vmul.f32 %v1706, 1.442695
        %v1724 = vpow.pop %v1723
        %v1725 = vmul.f32 %v1707, 1.442695
        %v1726 = vpow.pop %v1725
        %v1727 = vmul.f32 %v1708, 1.442695
        %v1728 = vpow.pop %v1727
        %v1729 = vmul.f32 %v1709, 1.442695
        %v1730 = vpow.pop %v1729
        %v1731 = vmul.f32 %v1710, 1.442695
        %v1732 = vpow.pop %v1731
        %v1733 = vmul.f32 %v1711, 1.442695
        %v1734 = vpow.pop %v1733
        %v1735 = vmul.f32 %v1712, 1.442695
        %v1736 = vpow.pop %v1735
        %v1737 = vmul.f32 %v1713, 1.442695
        %v1738 = vpow.pop %v1737
        %v1739 = vmul.f32 %v1714, 1.442695
        %v1740 = vpow.pop %v1739
        %v1741 = vmul.f32 %v1715, 1.442695
        %v1742 = vpow.pop %v1741
        %v1743 = vmul.f32 %v1716, 1.442695
        %v1744 = vpow.pop %v1743
        %v1745 = vmul.f32 %v1717, 1.442695
        %v1746 = vpow.pop %v1745
        %v1747 = vmul.f32 %v1718, 1.442695
        %v1748 = vpow.pop %v1747
        %v1749 = vmul.f32 %v1719, 1.442695
        %v1750 = vpow.pop %v1749
        %v1751 = vmul.f32 %v1720, 1.442695
        %v1752 = vpow.pop %v1751
        %v1753 = vsub.f32 %v1722, 1.0
        %v1754 = vsub.f32 %v1724, 1.0
        %v1755 = vsub.f32 %v1726, 1.0
        %v1756 = vsub.f32 %v1728, 1.0
        %v1757 = vsub.f32 %v1730, 1.0
        %v1758 = vsub.f32 %v1732, 1.0
        %v1759 = vsub.f32 %v1734, 1.0
        %v1760 = vsub.f32 %v1736, 1.0
        %v1761 = vsub.f32 %v1738, 1.0
        %v1762 = vsub.f32 %v1740, 1.0
        %v1763 = vsub.f32 %v1742, 1.0
        %v1764 = vsub.f32 %v1744, 1.0
        %v1765 = vsub.f32 %v1746, 1.0
        %v1766 = vsub.f32 %v1748, 1.0
        %v1767 = vsub.f32 %v1750, 1.0
        %v1768 = vsub.f32 %v1752, 1.0
        %v1769 = vsel %vm1689, %v1627, %v1753
        %v1770 = vsel %vm1690, %v1630, %v1754
        %v1771 = vsel %vm1691, %v1635, %v1755
        %v1772 = vsel %vm1692, %v1638, %v1756
        %v1773 = vsel %vm1693, %v1643, %v1757
        %v1774 = vsel %vm1694, %v1646, %v1758
        %v1775 = vsel %vm1695, %v1651, %v1759
        %v1776 = vsel %vm1696, %v1654, %v1760
        %v1777 = vsel %vm1697, %v1659, %v1761
        %v1778 = vsel %vm1698, %v1662, %v1762
        %v1779 = vsel %vm1699, %v1667, %v1763
        %v1780 = vsel %vm1700, %v1670, %v1764
        %v1781 = vsel %vm1701, %v1675, %v1765
        %v1782 = vsel %vm1702, %v1678, %v1766
        %v1783 = vsel %vm1703, %v1683, %v1767
        %v1784 = vsel %vm1704, %v1686, %v1768
        %v1785 = vpack.c.bf16 %v1770, %v1769
        %v1786 = vpack.c.bf16 %v1772, %v1771
        %v1787 = vpack.c.bf16 %v1774, %v1773
        %v1788 = vpack.c.bf16 %v1776, %v1775
        %v1789 = vpack.c.bf16 %v1778, %v1777
        %v1790 = vpack.c.bf16 %v1780, %v1779
        %v1791 = vpack.c.bf16 %v1782, %v1781
        %v1792 = vpack.c.bf16 %v1784, %v1783
        %v1793 = vld [vmem:[%s10] sm:$0xf]
        %v1794 = vld [vmem:[%s10 + $0x4] sm:$0xf]
        %v1795 = vld [vmem:[%s10 + $0x8] sm:$0xf]
        %v1796 = vld [vmem:[%s10 + $0xc] sm:$0xf]
        %v1797 = vpack.c.bf16 %v1098, %v1097
        %v1798 = vpack.c.bf16 %v1100, %v1099
        %v1799 = vpack.c.bf16 %v1102, %v1101
        %v1800 = vpack.c.bf16 %v1104, %v1103
        %v1801 = vpack.c.bf16 %v1106, %v1105
        %v1802 = vpack.c.bf16 %v1108, %v1107
        %v1803 = vpack.c.bf16 %v1110, %v1109
        %v1804 = vpack.c.bf16 %v1112, %v1111
        %v1805 = vld [vmem:[%s10 + $0x10] sm:$0xf]
        %v1806 = vld [vmem:[%s10 + $0x14] sm:$0xf]
        %v1807 = vld [vmem:[%s10 + $0x18] sm:$0xf]
        %v1808 = vld [vmem:[%s10 + $0x1c] sm:$0xf]
        %v1813 = vunpack.c.l.b16 %v1805
        %v1814 = vunpack.c.l.b16 %v1806
        %v1815 = vunpack.c.l.b16 %v1807
        %v1816 = vunpack.c.l.b16 %v1808
        %v1817 = vpack.c.b16 %v1814, %v1813
        %v1818 = vpack.c.b16 %v1816, %v1815
        %v1822 = vsel %vm895, %v1797, 0
        %v1825 = vsel %vm895, %v1798, 0
        %v1828 = vsel %vm895, %v1799, 0
        %v1831 = vsel %vm895, %v1800, 0
        %v1834 = vsel %vm895, %v1801, 0
        %v1837 = vsel %vm895, %v1802, 0
        %v1840 = vsel %vm895, %v1803, 0
        %v1843 = vsel %vm895, %v1804, 0
        %1845 = vmatprep.subr.bf16.mxu0 0
        %1846 = vmatpush1.bf16.msra.mxu0 %v1817
        %1847 = vmatprep.subr.bf16.mxu0 0
        %1848 = vmatpush1.bf16.msra.mxu0 %v1818
        %1849 = vmatprep.subr.bf16.mxu0 0
        %1850 = vmatpush1.bf16.msra.mxu0 0
        %1851 = vmatprep.subr.bf16.mxu0 0
        %1852 = vmatpush1.bf16.msra.mxu0 0
        %1853 = vmatprep.subr.bf16.mxu0 0
        %1854 = vmatpush1.bf16.msra.mxu0 0
        %1855 = vmatprep.subr.bf16.mxu0 0
        %1856 = vmatpush1.bf16.msra.mxu0 0
        %1857 = vmatprep.subr.bf16.mxu0 0
        %1858 = vmatpush1.bf16.msra.mxu0 0
        %1859 = vmatprep.subr.bf16.mxu0 0
        %1860 = vmatpush1.bf16.msra.mxu0 0
        %1861 = vmatprep.subr.bf16.mxu0 0
        %1862 = vmatpush1.bf16.msra.mxu0 0
        %1863 = vmatprep.subr.bf16.mxu0 0
        %1864 = vmatpush1.bf16.msra.mxu0 0
        %1865 = vmatprep.subr.bf16.mxu0 0
        %1866 = vmatpush1.bf16.msra.mxu0 0
        %1867 = vmatprep.subr.bf16.mxu0 0
        %1868 = vmatpush1.bf16.msra.mxu0 0
        %1869 = vmatprep.subr.bf16.mxu0 0
        %1870 = vmatpush1.bf16.msra.mxu0 0
        %1871 = vmatprep.subr.bf16.mxu0 0
        %1872 = vmatpush1.bf16.msra.mxu0 0
        %1873 = vmatprep.subr.bf16.mxu0 0
        %1874 = vmatpush1.bf16.msra.mxu0 0
        %1875 = vmatprep.subr.bf16.mxu0 0
        %1876 = vmatpush1.bf16.msra.mxu0 0
        %1877 = vmatprep.mubr.bf16.mxu0 0
        %1878 = vmatmul.mubr.bf16.gmra.mrb[0].mxu0 %v1822
        %v1879 = vpop.f32.mrb[0].mxu0
        %v1880 = vadd.f32 0.0, %v1879
        %v1881 = vpop.f32.mrb[0].mxu0
        %v1882 = vpop.f32.mrb[0].mxu0
        %v1883 = vadd.f32 0.0, %v1882
        %v1884 = vpop.f32.mrb[0].mxu0
        %1885 = vmatprep.mubr.bf16.mxu0 0
        %1886 = vmatmul.mubr.bf16.gmra.mrb[0].mxu0 %v1825
        %v1887 = vpop.f32.mrb[0].mxu0
        %v1888 = vadd.f32 0.0, %v1887
        %v1889 = vpop.f32.mrb[0].mxu0
        %v1890 = vpop.f32.mrb[0].mxu0
        %v1891 = vadd.f32 0.0, %v1890
        %v1892 = vpop.f32.mrb[0].mxu0
        %1893 = vmatprep.mubr.bf16.mxu0 0
        %1894 = vmatmul.mubr.bf16.gmra.mrb[0].mxu0 %v1828
        %v1895 = vpop.f32.mrb[0].mxu0
        %v1896 = vadd.f32 0.0, %v1895
        %v1897 = vpop.f32.mrb[0].mxu0
        %v1898 = vpop.f32.mrb[0].mxu0
        %v1899 = vadd.f32 0.0, %v1898
        %v1900 = vpop.f32.mrb[0].mxu0
        %1901 = vmatprep.mubr.bf16.mxu0 0
        %1902 = vmatmul.mubr.bf16.gmra.mrb[0].mxu0 %v1831
        %v1903 = vpop.f32.mrb[0].mxu0
        %v1904 = vadd.f32 0.0, %v1903
        %v1905 = vpop.f32.mrb[0].mxu0
        %v1906 = vpop.f32.mrb[0].mxu0
        %v1907 = vadd.f32 0.0, %v1906
        %v1908 = vpop.f32.mrb[0].mxu0
        %1909 = vmatprep.mubr.bf16.mxu0 0
        %1910 = vmatmul.mubr.bf16.gmra.mrb[0].mxu0 %v1834
        %v1911 = vpop.f32.mrb[0].mxu0
        %v1912 = vadd.f32 0.0, %v1911
        %v1913 = vpop.f32.mrb[0].mxu0
        %v1914 = vpop.f32.mrb[0].mxu0
        %v1915 = vadd.f32 0.0, %v1914
        %v1916 = vpop.f32.mrb[0].mxu0
        %1917 = vmatprep.mubr.bf16.mxu0 0
        %1918 = vmatmul.mubr.bf16.gmra.mrb[0].mxu0 %v1837
        %v1919 = vpop.f32.mrb[0].mxu0
        %v1920 = vadd.f32 0.0, %v1919
        %v1921 = vpop.f32.mrb[0].mxu0
        %v1922 = vpop.f32.mrb[0].mxu0
        %v1923 = vadd.f32 0.0, %v1922
        %v1924 = vpop.f32.mrb[0].mxu0
        %1925 = vmatprep.mubr.bf16.mxu0 0
        %1926 = vmatmul.mubr.bf16.gmra.mrb[0].mxu0 %v1840
        %v1927 = vpop.f32.mrb[0].mxu0
        %v1928 = vadd.f32 0.0, %v1927
        %v1929 = vpop.f32.mrb[0].mxu0
        %v1930 = vpop.f32.mrb[0].mxu0
        %v1931 = vadd.f32 0.0, %v1930
        %v1932 = vpop.f32.mrb[0].mxu0
        %1933 = vmatprep.mubr.bf16.mxu0 0
        %1934 = vmatmul.mubr.bf16.gmra.mrb[0].mxu0 %v1843
        %v1935 = vpop.f32.mrb[0].mxu0
        %v1936 = vadd.f32 0.0, %v1935
        %v1937 = vpop.f32.mrb[0].mxu0
        %v1938 = vpop.f32.mrb[0].mxu0
        %v1939 = vadd.f32 0.0, %v1938
        %v1940 = vpop.f32.mrb[0].mxu0
        %1941 = vdwg.mxu0
        %v1946 = vunpack.c.l.b16 %v1793
        %v1947 = vunpack.c.l.b16 %v1794
        %v1948 = vunpack.c.l.b16 %v1795
        %v1949 = vunpack.c.l.b16 %v1796
        %v1950 = vpack.c.b16 %v1947, %v1946
        %v1951 = vpack.c.b16 %v1949, %v1948
        %v1955 = vsel %vm895, %v1785, 0
        %v1958 = vsel %vm895, %v1786, 0
        %v1961 = vsel %vm895, %v1787, 0
        %v1964 = vsel %vm895, %v1788, 0
        %v1967 = vsel %vm895, %v1789, 0
        %v1970 = vsel %vm895, %v1790, 0
        %v1973 = vsel %vm895, %v1791, 0
        %v1976 = vsel %vm895, %v1792, 0
        %1978 = vmatprep.subr.bf16.mxu0 0
        %1979 = vmatpush1.bf16.msra.mxu0 %v1950
        %1980 = vmatprep.subr.bf16.mxu0 0
        %1981 = vmatpush1.bf16.msra.mxu0 %v1951
        %1982 = vmatprep.subr.bf16.mxu0 0
        %1983 = vmatpush1.bf16.msra.mxu0 0
        %1984 = vmatprep.subr.bf16.mxu0 0
        %1985 = vmatpush1.bf16.msra.mxu0 0
        %1986 = vmatprep.subr.bf16.mxu0 0
        %1987 = vmatpush1.bf16.msra.mxu0 0
        %1988 = vmatprep.subr.bf16.mxu0 0
        %1989 = vmatpush1.bf16.msra.mxu0 0
        %1990 = vmatprep.subr.bf16.mxu0 0
        %1991 = vmatpush1.bf16.msra.mxu0 0
        %1992 = vmatprep.subr.bf16.mxu0 0
        %1993 = vmatpush1.bf16.msra.mxu0 0
        %1994 = vmatprep.subr.bf16.mxu0 0
        %1995 = vmatpush1.bf16.msra.mxu0 0
        %1996 = vmatprep.subr.bf16.mxu0 0
        %1997 = vmatpush1.bf16.msra.mxu0 0
        %1998 = vmatprep.subr.bf16.mxu0 0
        %1999 = vmatpush1.bf16.msra.mxu0 0
        %2000 = vmatprep.subr.bf16.mxu0 0
        %2001 = vmatpush1.bf16.msra.mxu0 0
        %2002 = vmatprep.subr.bf16.mxu0 0
        %2003 = vmatpush1.bf16.msra.mxu0 0
        %2004 = vmatprep.subr.bf16.mxu0 0
        %2005 = vmatpush1.bf16.msra.mxu0 0
        %2006 = vmatprep.subr.bf16.mxu0 0
        %2007 = vmatpush1.bf16.msra.mxu0 0
        %2008 = vmatprep.subr.bf16.mxu0 0
        %2009 = vmatpush1.bf16.msra.mxu0 0
        %2010 = vmatprep.mubr.bf16.mxu0 0
        %2011 = vmatmul.mubr.bf16.gmra.mrb[0].mxu0 %v1955
        %v2012 = vpop.f32.mrb[0].mxu0
        %v2013 = vadd.f32 %v1880, %v2012
        %v2014 = vpop.f32.mrb[0].mxu0
        %v2015 = vpop.f32.mrb[0].mxu0
        %v2016 = vadd.f32 %v1883, %v2015
        %v2017 = vpop.f32.mrb[0].mxu0
        %2018 = vmatprep.mubr.bf16.mxu0 0
        %2019 = vmatmul.mubr.bf16.gmra.mrb[0].mxu0 %v1958
        %v2020 = vpop.f32.mrb[0].mxu0
        %v2021 = vadd.f32 %v1888, %v2020
        %v2022 = vpop.f32.mrb[0].mxu0
        %v2023 = vpop.f32.mrb[0].mxu0
        %v2024 = vadd.f32 %v1891, %v2023
        %v2025 = vpop.f32.mrb[0].mxu0
        %2026 = vmatprep.mubr.bf16.mxu0 0
        %2027 = vmatmul.mubr.bf16.gmra.mrb[0].mxu0 %v1961
        %v2028 = vpop.f32.mrb[0].mxu0
        %v2029 = vadd.f32 %v1896, %v2028
        %v2030 = vpop.f32.mrb[0].mxu0
        %v2031 = vpop.f32.mrb[0].mxu0
        %v2032 = vadd.f32 %v1899, %v2031
        %v2033 = vpop.f32.mrb[0].mxu0
        %2034 = vmatprep.mubr.bf16.mxu0 0
        %2035 = vmatmul.mubr.bf16.gmra.mrb[0].mxu0 %v1964
        %v2036 = vpop.f32.mrb[0].mxu0
        %v2037 = vadd.f32 %v1904, %v2036
        %v2038 = vpop.f32.mrb[0].mxu0
        %v2039 = vpop.f32.mrb[0].mxu0
        %v2040 = vadd.f32 %v1907, %v2039
        %v2041 = vpop.f32.mrb[0].mxu0
        %2042 = vmatprep.mubr.bf16.mxu0 0
        %2043 = vmatmul.mubr.bf16.gmra.mrb[0].mxu0 %v1967
        %v2044 = vpop.f32.mrb[0].mxu0
        %v2045 = vadd.f32 %v1912, %v2044
        %v2046 = vpop.f32.mrb[0].mxu0
        %v2047 = vpop.f32.mrb[0].mxu0
        %v2048 = vadd.f32 %v1915, %v2047
        %v2049 = vpop.f32.mrb[0].mxu0
        %2050 = vmatprep.mubr.bf16.mxu0 0
        %2051 = vmatmul.mubr.bf16.gmra.mrb[0].mxu0 %v1970
        %v2052 = vpop.f32.mrb[0].mxu0
        %v2053 = vadd.f32 %v1920, %v2052
        %v2054 = vpop.f32.mrb[0].mxu0
        %v2055 = vpop.f32.mrb[0].mxu0
        %v2056 = vadd.f32 %v1923, %v2055
        %v2057 = vpop.f32.mrb[0].mxu0
        %2058 = vmatprep.mubr.bf16.mxu0 0
        %2059 = vmatmul.mubr.bf16.gmra.mrb[0].mxu0 %v1973
        %v2060 = vpop.f32.mrb[0].mxu0
        %v2061 = vadd.f32 %v1928, %v2060
        %v2062 = vpop.f32.mrb[0].mxu0
        %v2063 = vpop.f32.mrb[0].mxu0
        %v2064 = vadd.f32 %v1931, %v2063
        %v2065 = vpop.f32.mrb[0].mxu0
        %2066 = vmatprep.mubr.bf16.mxu0 0
        %2067 = vmatmul.mubr.bf16.gmra.mrb[0].mxu0 %v1976
        %v2068 = vpop.f32.mrb[0].mxu0
        %v2069 = vadd.f32 %v1936, %v2068
        %v2070 = vpop.f32.mrb[0].mxu0
        %v2071 = vpop.f32.mrb[0].mxu0
        %v2072 = vadd.f32 %v1939, %v2071
        %v2073 = vpop.f32.mrb[0].mxu0
        %2074 = vdwg.mxu0
        %v2075 = vadd.f32 %v2013, %v1097
        %v2076 = vadd.f32 %v2016, %v1098
        %v2077 = vadd.f32 %v2021, %v1099
        %v2078 = vadd.f32 %v2024, %v1100
        %v2079 = vadd.f32 %v2029, %v1101
        %v2080 = vadd.f32 %v2032, %v1102
        %v2081 = vadd.f32 %v2037, %v1103
        %v2082 = vadd.f32 %v2040, %v1104
        %v2083 = vadd.f32 %v2045, %v1105
        %v2084 = vadd.f32 %v2048, %v1106
        %v2085 = vadd.f32 %v2053, %v1107
        %v2086 = vadd.f32 %v2056, %v1108
        %v2087 = vadd.f32 %v2061, %v1109
        %v2088 = vadd.f32 %v2064, %v1110
        %v2089 = vadd.f32 %v2069, %v1111
        %v2090 = vadd.f32 %v2072, %v1112
        %v2091 = vadd.f32 %v2075, %v1769
        %v2092 = vadd.f32 %v2076, %v1770
        %v2093 = vadd.f32 %v2077, %v1771
        %v2094 = vadd.f32 %v2078, %v1772
        %v2095 = vadd.f32 %v2079, %v1773
        %v2096 = vadd.f32 %v2080, %v1774
        %v2097 = vadd.f32 %v2081, %v1775
        %v2098 = vadd.f32 %v2082, %v1776
        %v2099 = vadd.f32 %v2083, %v1777
        %v2100 = vadd.f32 %v2084, %v1778
        %v2101 = vadd.f32 %v2085, %v1779
        %v2102 = vadd.f32 %v2086, %v1780
        %v2103 = vadd.f32 %v2087, %v1781
        %v2104 = vadd.f32 %v2088, %v1782
        %v2105 = vadd.f32 %v2089, %v1783
        %v2106 = vadd.f32 %v2090, %v1784
        %vm2107 = vcmp.gt.f32.partialorder %v2091, 0.0
        %vm2108 = vcmp.gt.f32.partialorder %v2092, 0.0
        %vm2109 = vcmp.gt.f32.partialorder %v2093, 0.0
        %vm2110 = vcmp.gt.f32.partialorder %v2094, 0.0
        %vm2111 = vcmp.gt.f32.partialorder %v2095, 0.0
        %vm2112 = vcmp.gt.f32.partialorder %v2096, 0.0
        %vm2113 = vcmp.gt.f32.partialorder %v2097, 0.0
        %vm2114 = vcmp.gt.f32.partialorder %v2098, 0.0
        %vm2115 = vcmp.gt.f32.partialorder %v2099, 0.0
        %vm2116 = vcmp.gt.f32.partialorder %v2100, 0.0
        %vm2117 = vcmp.gt.f32.partialorder %v2101, 0.0
        %vm2118 = vcmp.gt.f32.partialorder %v2102, 0.0
        %vm2119 = vcmp.gt.f32.partialorder %v2103, 0.0
        %vm2120 = vcmp.gt.f32.partialorder %v2104, 0.0
        %vm2121 = vcmp.gt.f32.partialorder %v2105, 0.0
        %vm2122 = vcmp.gt.f32.partialorder %v2106, 0.0
        %v2123 = vmin.f32 %v2091, 0.0
        %v2124 = vmin.f32 %v2092, 0.0
        %v2125 = vmin.f32 %v2093, 0.0
        %v2126 = vmin.f32 %v2094, 0.0
        %v2127 = vmin.f32 %v2095, 0.0
        %v2128 = vmin.f32 %v2096, 0.0
        %v2129 = vmin.f32 %v2097, 0.0
        %v2130 = vmin.f32 %v2098, 0.0
        %v2131 = vmin.f32 %v2099, 0.0
        %v2132 = vmin.f32 %v2100, 0.0
        %v2133 = vmin.f32 %v2101, 0.0
        %v2134 = vmin.f32 %v2102, 0.0
        %v2135 = vmin.f32 %v2103, 0.0
        %v2136 = vmin.f32 %v2104, 0.0
        %v2137 = vmin.f32 %v2105, 0.0
        %v2138 = vmin.f32 %v2106, 0.0
        %v2139 = vmul.f32 %v2123, 1.442695
        %v2140 = vpow.pop %v2139
        %v2141 = vmul.f32 %v2124, 1.442695
        %v2142 = vpow.pop %v2141
        %v2143 = vmul.f32 %v2125, 1.442695
        %v2144 = vpow.pop %v2143
        %v2145 = vmul.f32 %v2126, 1.442695
        %v2146 = vpow.pop %v2145
        %v2147 = vmul.f32 %v2127, 1.442695
        %v2148 = vpow.pop %v2147
        %v2149 = vmul.f32 %v2128, 1.442695
        %v2150 = vpow.pop %v2149
        %v2151 = vmul.f32 %v2129, 1.442695
        %v2152 = vpow.pop %v2151
        %v2153 = vmul.f32 %v2130, 1.442695
        %v2154 = vpow.pop %v2153
        %v2155 = vmul.f32 %v2131, 1.442695
        %v2156 = vpow.pop %v2155
        %v2157 = vmul.f32 %v2132, 1.442695
        %v2158 = vpow.pop %v2157
        %v2159 = vmul.f32 %v2133, 1.442695
        %v2160 = vpow.pop %v2159
        %v2161 = vmul.f32 %v2134, 1.442695
        %v2162 = vpow.pop %v2161
        %v2163 = vmul.f32 %v2135, 1.442695
        %v2164 = vpow.pop %v2163
        %v2165 = vmul.f32 %v2136, 1.442695
        %v2166 = vpow.pop %v2165
        %v2167 = vmul.f32 %v2137, 1.442695
        %v2168 = vpow.pop %v2167
        %v2169 = vmul.f32 %v2138, 1.442695
        %v2170 = vpow.pop %v2169
        %v2171 = vsub.f32 %v2140, 1.0
        %v2172 = vsub.f32 %v2142, 1.0
        %v2173 = vsub.f32 %v2144, 1.0
        %v2174 = vsub.f32 %v2146, 1.0
        %v2175 = vsub.f32 %v2148, 1.0
        %v2176 = vsub.f32 %v2150, 1.0
        %v2177 = vsub.f32 %v2152, 1.0
        %v2178 = vsub.f32 %v2154, 1.0
        %v2179 = vsub.f32 %v2156, 1.0
        %v2180 = vsub.f32 %v2158, 1.0
        %v2181 = vsub.f32 %v2160, 1.0
        %v2182 = vsub.f32 %v2162, 1.0
        %v2183 = vsub.f32 %v2164, 1.0
        %v2184 = vsub.f32 %v2166, 1.0
        %v2185 = vsub.f32 %v2168, 1.0
        %v2186 = vsub.f32 %v2170, 1.0
        %v2187 = vsel %vm2107, %v2091, %v2171
        %v2188 = vsel %vm2108, %v2092, %v2172
        %v2189 = vsel %vm2109, %v2093, %v2173
        %v2190 = vsel %vm2110, %v2094, %v2174
        %v2191 = vsel %vm2111, %v2095, %v2175
        %v2192 = vsel %vm2112, %v2096, %v2176
        %v2193 = vsel %vm2113, %v2097, %v2177
        %v2194 = vsel %vm2114, %v2098, %v2178
        %v2195 = vsel %vm2115, %v2099, %v2179
        %v2196 = vsel %vm2116, %v2100, %v2180
        %v2197 = vsel %vm2117, %v2101, %v2181
        %v2198 = vsel %vm2118, %v2102, %v2182
        %v2199 = vsel %vm2119, %v2103, %v2183
        %v2200 = vsel %vm2120, %v2104, %v2184
        %v2201 = vsel %vm2121, %v2105, %v2185
        %v2202 = vsel %vm2122, %v2106, %v2186
        %v2203 = vpack.c.bf16 %v2188, %v2187
        %v2204 = vpack.c.bf16 %v2190, %v2189
        %v2205 = vpack.c.bf16 %v2192, %v2191
        %v2206 = vpack.c.bf16 %v2194, %v2193
        %v2207 = vpack.c.bf16 %v2196, %v2195
        %v2208 = vpack.c.bf16 %v2198, %v2197
        %v2209 = vpack.c.bf16 %v2200, %v2199
        %v2210 = vpack.c.bf16 %v2202, %v2201
        %v2211 = vld [vmem:[%s11] sm:$0xf]
        %v2212 = vld [vmem:[%s11 + $0x4] sm:$0xf]
        %v2213 = vld [vmem:[%s11 + $0x8] sm:$0xf]
        %v2214 = vld [vmem:[%s11 + $0xc] sm:$0xf]
        %v2215 = vld [vmem:[%s12] sm:$0x1]
        %v2217 = vlaneseq
        %v2218 = vshrl.u32 %v2217, 7
        %v2219 = vsub.s32 0, %v2218
        %v2220 = vrot.slane %v2215, %v2219
        %v2226 = vunpack.c.l.b16 %v2211
        %v2227 = vunpack.c.l.b16 %v2212
        %v2228 = vunpack.c.l.b16 %v2213
        %v2229 = vunpack.c.l.b16 %v2214
        %v2230 = vpack.c.b16 %v2227, %v2226
        %v2231 = vpack.c.b16 %v2229, %v2228
        %v2235 = vsel %vm895, %v2203, 0
        %v2238 = vsel %vm895, %v2204, 0
        %v2241 = vsel %vm895, %v2205, 0
        %v2244 = vsel %vm895, %v2206, 0
        %v2247 = vsel %vm895, %v2207, 0
        %v2250 = vsel %vm895, %v2208, 0
        %v2253 = vsel %vm895, %v2209, 0
        %v2256 = vsel %vm895, %v2210, 0
        %2258 = vmatprep.subr.bf16.mxu0 0
        %2259 = vmatpush1.bf16.msra.mxu0 %v2230
        %2260 = vmatprep.subr.bf16.mxu0 0
        %2261 = vmatpush1.bf16.msra.mxu0 %v2231
        %2262 = vmatprep.subr.bf16.mxu0 0
        %2263 = vmatpush1.bf16.msra.mxu0 0
        %2264 = vmatprep.subr.bf16.mxu0 0
        %2265 = vmatpush1.bf16.msra.mxu0 0
        %2266 = vmatprep.subr.bf16.mxu0 0
        %2267 = vmatpush1.bf16.msra.mxu0 0
        %2268 = vmatprep.subr.bf16.mxu0 0
        %2269 = vmatpush1.bf16.msra.mxu0 0
        %2270 = vmatprep.subr.bf16.mxu0 0
        %2271 = vmatpush1.bf16.msra.mxu0 0
        %2272 = vmatprep.subr.bf16.mxu0 0
        %2273 = vmatpush1.bf16.msra.mxu0 0
        %2274 = vmatprep.subr.bf16.mxu0 0
        %2275 = vmatpush1.bf16.msra.mxu0 0
        %2276 = vmatprep.subr.bf16.mxu0 0
        %2277 = vmatpush1.bf16.msra.mxu0 0
        %2278 = vmatprep.subr.bf16.mxu0 0
        %2279 = vmatpush1.bf16.msra.mxu0 0
        %2280 = vmatprep.subr.bf16.mxu0 0
        %2281 = vmatpush1.bf16.msra.mxu0 0
        %2282 = vmatprep.subr.bf16.mxu0 0
        %2283 = vmatpush1.bf16.msra.mxu0 0
        %2284 = vmatprep.subr.bf16.mxu0 0
        %2285 = vmatpush1.bf16.msra.mxu0 0
        %2286 = vmatprep.subr.bf16.mxu0 0
        %2287 = vmatpush1.bf16.msra.mxu0 0
        %2288 = vmatprep.subr.bf16.mxu0 0
        %2289 = vmatpush1.bf16.msra.mxu0 0
        %2290 = vmatprep.mubr.bf16.mxu0 0
        %2291 = vmatmul.mubr.bf16.gmra.mrb[0].mxu0 %v2235
        %v2292 = vpop.f32.mrb[0].mxu0
        %v2293 = vadd.f32 %v2220, %v2292
        %v2294 = vpop.f32.mrb[0].mxu0
        %v2295 = vpop.f32.mrb[0].mxu0
        %v2296 = vadd.f32 %v2220, %v2295
        %v2297 = vpop.f32.mrb[0].mxu0
        %2298 = vmatprep.mubr.bf16.mxu0 0
        %2299 = vmatmul.mubr.bf16.gmra.mrb[0].mxu0 %v2238
        %v2300 = vpop.f32.mrb[0].mxu0
        %v2301 = vadd.f32 %v2220, %v2300
        %v2302 = vpop.f32.mrb[0].mxu0
        %v2303 = vpop.f32.mrb[0].mxu0
        %v2304 = vadd.f32 %v2220, %v2303
        %v2305 = vpop.f32.mrb[0].mxu0
        %2306 = vmatprep.mubr.bf16.mxu0 0
        %2307 = vmatmul.mubr.bf16.gmra.mrb[0].mxu0 %v2241
        %v2308 = vpop.f32.mrb[0].mxu0
        %v2309 = vadd.f32 %v2220, %v2308
        %v2310 = vpop.f32.mrb[0].mxu0
        %v2311 = vpop.f32.mrb[0].mxu0
        %v2312 = vadd.f32 %v2220, %v2311
        %v2313 = vpop.f32.mrb[0].mxu0
        %2314 = vmatprep.mubr.bf16.mxu0 0
        %2315 = vmatmul.mubr.bf16.gmra.mrb[0].mxu0 %v2244
        %v2316 = vpop.f32.mrb[0].mxu0
        %v2317 = vadd.f32 %v2220, %v2316
        %v2318 = vpop.f32.mrb[0].mxu0
        %v2319 = vpop.f32.mrb[0].mxu0
        %v2320 = vadd.f32 %v2220, %v2319
        %v2321 = vpop.f32.mrb[0].mxu0
        %2322 = vmatprep.mubr.bf16.mxu0 0
        %2323 = vmatmul.mubr.bf16.gmra.mrb[0].mxu0 %v2247
        %v2324 = vpop.f32.mrb[0].mxu0
        %v2325 = vadd.f32 %v2220, %v2324
        %v2326 = vpop.f32.mrb[0].mxu0
        %v2327 = vpop.f32.mrb[0].mxu0
        %v2328 = vadd.f32 %v2220, %v2327
        %v2329 = vpop.f32.mrb[0].mxu0
        %2330 = vmatprep.mubr.bf16.mxu0 0
        %2331 = vmatmul.mubr.bf16.gmra.mrb[0].mxu0 %v2250
        %v2332 = vpop.f32.mrb[0].mxu0
        %v2333 = vadd.f32 %v2220, %v2332
        %v2334 = vpop.f32.mrb[0].mxu0
        %v2335 = vpop.f32.mrb[0].mxu0
        %v2336 = vadd.f32 %v2220, %v2335
        %v2337 = vpop.f32.mrb[0].mxu0
        %2338 = vmatprep.mubr.bf16.mxu0 0
        %2339 = vmatmul.mubr.bf16.gmra.mrb[0].mxu0 %v2253
        %v2340 = vpop.f32.mrb[0].mxu0
        %v2341 = vadd.f32 %v2220, %v2340
        %v2342 = vpop.f32.mrb[0].mxu0
        %v2343 = vpop.f32.mrb[0].mxu0
        %v2344 = vadd.f32 %v2220, %v2343
        %v2345 = vpop.f32.mrb[0].mxu0
        %2346 = vmatprep.mubr.bf16.mxu0 0
        %2347 = vmatmul.mubr.bf16.gmra.mrb[0].mxu0 %v2256
        %v2348 = vpop.f32.mrb[0].mxu0
        %v2349 = vadd.f32 %v2220, %v2348
        %v2350 = vpop.f32.mrb[0].mxu0
        %v2351 = vpop.f32.mrb[0].mxu0
        %v2352 = vadd.f32 %v2220, %v2351
        %v2353 = vpop.f32.mrb[0].mxu0
        %2354 = vdwg.mxu0
        %vm2355 = vcmp.gt.f32.partialorder %v2293, 0.0
        %vm2356 = vcmp.gt.f32.partialorder %v2296, 0.0
        %vm2357 = vcmp.gt.f32.partialorder %v2301, 0.0
        %vm2358 = vcmp.gt.f32.partialorder %v2304, 0.0
        %vm2359 = vcmp.gt.f32.partialorder %v2309, 0.0
        %vm2360 = vcmp.gt.f32.partialorder %v2312, 0.0
        %vm2361 = vcmp.gt.f32.partialorder %v2317, 0.0
        %vm2362 = vcmp.gt.f32.partialorder %v2320, 0.0
        %vm2363 = vcmp.gt.f32.partialorder %v2325, 0.0
        %vm2364 = vcmp.gt.f32.partialorder %v2328, 0.0
        %vm2365 = vcmp.gt.f32.partialorder %v2333, 0.0
        %vm2366 = vcmp.gt.f32.partialorder %v2336, 0.0
        %vm2367 = vcmp.gt.f32.partialorder %v2341, 0.0
        %vm2368 = vcmp.gt.f32.partialorder %v2344, 0.0
        %vm2369 = vcmp.gt.f32.partialorder %v2349, 0.0
        %vm2370 = vcmp.gt.f32.partialorder %v2352, 0.0
        %v2371 = vmin.f32 %v2293, 0.0
        %v2372 = vmin.f32 %v2296, 0.0
        %v2373 = vmin.f32 %v2301, 0.0
        %v2374 = vmin.f32 %v2304, 0.0
        %v2375 = vmin.f32 %v2309, 0.0
        %v2376 = vmin.f32 %v2312, 0.0
        %v2377 = vmin.f32 %v2317, 0.0
        %v2378 = vmin.f32 %v2320, 0.0
        %v2379 = vmin.f32 %v2325, 0.0
        %v2380 = vmin.f32 %v2328, 0.0
        %v2381 = vmin.f32 %v2333, 0.0
        %v2382 = vmin.f32 %v2336, 0.0
        %v2383 = vmin.f32 %v2341, 0.0
        %v2384 = vmin.f32 %v2344, 0.0
        %v2385 = vmin.f32 %v2349, 0.0
        %v2386 = vmin.f32 %v2352, 0.0
        %v2387 = vmul.f32 %v2371, 1.442695
        %v2388 = vpow.pop %v2387
        %v2389 = vmul.f32 %v2372, 1.442695
        %v2390 = vpow.pop %v2389
        %v2391 = vmul.f32 %v2373, 1.442695
        %v2392 = vpow.pop %v2391
        %v2393 = vmul.f32 %v2374, 1.442695
        %v2394 = vpow.pop %v2393
        %v2395 = vmul.f32 %v2375, 1.442695
        %v2396 = vpow.pop %v2395
        %v2397 = vmul.f32 %v2376, 1.442695
        %v2398 = vpow.pop %v2397
        %v2399 = vmul.f32 %v2377, 1.442695
        %v2400 = vpow.pop %v2399
        %v2401 = vmul.f32 %v2378, 1.442695
        %v2402 = vpow.pop %v2401
        %v2403 = vmul.f32 %v2379, 1.442695
        %v2404 = vpow.pop %v2403
        %v2405 = vmul.f32 %v2380, 1.442695
        %v2406 = vpow.pop %v2405
        %v2407 = vmul.f32 %v2381, 1.442695
        %v2408 = vpow.pop %v2407
        %v2409 = vmul.f32 %v2382, 1.442695
        %v2410 = vpow.pop %v2409
        %v2411 = vmul.f32 %v2383, 1.442695
        %v2412 = vpow.pop %v2411
        %v2413 = vmul.f32 %v2384, 1.442695
        %v2414 = vpow.pop %v2413
        %v2415 = vmul.f32 %v2385, 1.442695
        %v2416 = vpow.pop %v2415
        %v2417 = vmul.f32 %v2386, 1.442695
        %v2418 = vpow.pop %v2417
        %v2419 = vsub.f32 %v2388, 1.0
        %v2420 = vsub.f32 %v2390, 1.0
        %v2421 = vsub.f32 %v2392, 1.0
        %v2422 = vsub.f32 %v2394, 1.0
        %v2423 = vsub.f32 %v2396, 1.0
        %v2424 = vsub.f32 %v2398, 1.0
        %v2425 = vsub.f32 %v2400, 1.0
        %v2426 = vsub.f32 %v2402, 1.0
        %v2427 = vsub.f32 %v2404, 1.0
        %v2428 = vsub.f32 %v2406, 1.0
        %v2429 = vsub.f32 %v2408, 1.0
        %v2430 = vsub.f32 %v2410, 1.0
        %v2431 = vsub.f32 %v2412, 1.0
        %v2432 = vsub.f32 %v2414, 1.0
        %v2433 = vsub.f32 %v2416, 1.0
        %v2434 = vsub.f32 %v2418, 1.0
        %v2435 = vsel %vm2355, %v2293, %v2419
        %v2436 = vsel %vm2356, %v2296, %v2420
        %v2437 = vsel %vm2357, %v2301, %v2421
        %v2438 = vsel %vm2358, %v2304, %v2422
        %v2439 = vsel %vm2359, %v2309, %v2423
        %v2440 = vsel %vm2360, %v2312, %v2424
        %v2441 = vsel %vm2361, %v2317, %v2425
        %v2442 = vsel %vm2362, %v2320, %v2426
        %v2443 = vsel %vm2363, %v2325, %v2427
        %v2444 = vsel %vm2364, %v2328, %v2428
        %v2445 = vsel %vm2365, %v2333, %v2429
        %v2446 = vsel %vm2366, %v2336, %v2430
        %v2447 = vsel %vm2367, %v2341, %v2431
        %v2448 = vsel %vm2368, %v2344, %v2432
        %v2449 = vsel %vm2369, %v2349, %v2433
        %v2450 = vsel %vm2370, %v2352, %v2434
        %v2451 = vpack.c.bf16 %v2436, %v2435
        %v2452 = vpack.c.bf16 %v2438, %v2437
        %v2453 = vpack.c.bf16 %v2440, %v2439
        %v2454 = vpack.c.bf16 %v2442, %v2441
        %v2455 = vpack.c.bf16 %v2444, %v2443
        %v2456 = vpack.c.bf16 %v2446, %v2445
        %v2457 = vpack.c.bf16 %v2448, %v2447
        %v2458 = vpack.c.bf16 %v2450, %v2449
        %v2459 = vld [vmem:[%s13] sm:$0xf]
        %v2460 = vld [vmem:[%s13 + $0x4] sm:$0xf]
        %v2461 = vld [vmem:[%s13 + $0x8] sm:$0xf]
        %v2462 = vld [vmem:[%s13 + $0xc] sm:$0xf]
        %v2463 = vld [vmem:[%s14] sm:$0x1]
        %v2465 = vlaneseq
        %v2466 = vshrl.u32 %v2465, 7
        %v2467 = vsub.s32 0, %v2466
        %v2468 = vrot.slane %v2463, %v2467
        %v2474 = vunpack.c.l.b16 %v2459
        %v2475 = vunpack.c.l.b16 %v2460
        %v2476 = vunpack.c.l.b16 %v2461
        %v2477 = vunpack.c.l.b16 %v2462
        %v2478 = vpack.c.b16 %v2475, %v2474
        %v2479 = vpack.c.b16 %v2477, %v2476
        %v2483 = vsel %vm895, %v2451, 0
        %v2486 = vsel %vm895, %v2452, 0
        %v2489 = vsel %vm895, %v2453, 0
        %v2492 = vsel %vm895, %v2454, 0
        %v2495 = vsel %vm895, %v2455, 0
        %v2498 = vsel %vm895, %v2456, 0
        %v2501 = vsel %vm895, %v2457, 0
        %v2504 = vsel %vm895, %v2458, 0
        %2506 = vmatprep.subr.bf16.mxu0 0
        %2507 = vmatpush1.bf16.msra.mxu0 %v2478
        %2508 = vmatprep.subr.bf16.mxu0 0
        %2509 = vmatpush1.bf16.msra.mxu0 %v2479
        %2510 = vmatprep.subr.bf16.mxu0 0
        %2511 = vmatpush1.bf16.msra.mxu0 0
        %2512 = vmatprep.subr.bf16.mxu0 0
        %2513 = vmatpush1.bf16.msra.mxu0 0
        %2514 = vmatprep.subr.bf16.mxu0 0
        %2515 = vmatpush1.bf16.msra.mxu0 0
        %2516 = vmatprep.subr.bf16.mxu0 0
        %2517 = vmatpush1.bf16.msra.mxu0 0
        %2518 = vmatprep.subr.bf16.mxu0 0
        %2519 = vmatpush1.bf16.msra.mxu0 0
        %2520 = vmatprep.subr.bf16.mxu0 0
        %2521 = vmatpush1.bf16.msra.mxu0 0
        %2522 = vmatprep.subr.bf16.mxu0 0
        %2523 = vmatpush1.bf16.msra.mxu0 0
        %2524 = vmatprep.subr.bf16.mxu0 0
        %2525 = vmatpush1.bf16.msra.mxu0 0
        %2526 = vmatprep.subr.bf16.mxu0 0
        %2527 = vmatpush1.bf16.msra.mxu0 0
        %2528 = vmatprep.subr.bf16.mxu0 0
        %2529 = vmatpush1.bf16.msra.mxu0 0
        %2530 = vmatprep.subr.bf16.mxu0 0
        %2531 = vmatpush1.bf16.msra.mxu0 0
        %2532 = vmatprep.subr.bf16.mxu0 0
        %2533 = vmatpush1.bf16.msra.mxu0 0
        %2534 = vmatprep.subr.bf16.mxu0 0
        %2535 = vmatpush1.bf16.msra.mxu0 0
        %2536 = vmatprep.subr.bf16.mxu0 0
        %2537 = vmatpush1.bf16.msra.mxu0 0
        %2538 = vmatprep.mubr.bf16.mxu0 0
        %2539 = vmatmul.mubr.bf16.gmra.mrb[0].mxu0 %v2483
        %v2540 = vpop.f32.mrb[0].mxu0
        %v2541 = vadd.f32 %v2468, %v2540
        %v2542 = vpop.f32.mrb[0].mxu0
        %v2543 = vpop.f32.mrb[0].mxu0
        %v2544 = vadd.f32 %v2468, %v2543
        %v2545 = vpop.f32.mrb[0].mxu0
        %2546 = vmatprep.mubr.bf16.mxu0 0
        %2547 = vmatmul.mubr.bf16.gmra.mrb[0].mxu0 %v2486
        %v2548 = vpop.f32.mrb[0].mxu0
        %v2549 = vadd.f32 %v2468, %v2548
        %v2550 = vpop.f32.mrb[0].mxu0
        %v2551 = vpop.f32.mrb[0].mxu0
        %v2552 = vadd.f32 %v2468, %v2551
        %v2553 = vpop.f32.mrb[0].mxu0
        %2554 = vmatprep.mubr.bf16.mxu0 0
        %2555 = vmatmul.mubr.bf16.gmra.mrb[0].mxu0 %v2489
        %v2556 = vpop.f32.mrb[0].mxu0
        %v2557 = vadd.f32 %v2468, %v2556
        %v2558 = vpop.f32.mrb[0].mxu0
        %v2559 = vpop.f32.mrb[0].mxu0
        %v2560 = vadd.f32 %v2468, %v2559
        %v2561 = vpop.f32.mrb[0].mxu0
        %2562 = vmatprep.mubr.bf16.mxu0 0
        %2563 = vmatmul.mubr.bf16.gmra.mrb[0].mxu0 %v2492
        %v2564 = vpop.f32.mrb[0].mxu0
        %v2565 = vadd.f32 %v2468, %v2564
        %v2566 = vpop.f32.mrb[0].mxu0
        %v2567 = vpop.f32.mrb[0].mxu0
        %v2568 = vadd.f32 %v2468, %v2567
        %v2569 = vpop.f32.mrb[0].mxu0
        %2570 = vmatprep.mubr.bf16.mxu0 0
        %2571 = vmatmul.mubr.bf16.gmra.mrb[0].mxu0 %v2495
        %v2572 = vpop.f32.mrb[0].mxu0
        %v2573 = vadd.f32 %v2468, %v2572
        %v2574 = vpop.f32.mrb[0].mxu0
        %v2575 = vpop.f32.mrb[0].mxu0
        %v2576 = vadd.f32 %v2468, %v2575
        %v2577 = vpop.f32.mrb[0].mxu0
        %2578 = vmatprep.mubr.bf16.mxu0 0
        %2579 = vmatmul.mubr.bf16.gmra.mrb[0].mxu0 %v2498
        %v2580 = vpop.f32.mrb[0].mxu0
        %v2581 = vadd.f32 %v2468, %v2580
        %v2582 = vpop.f32.mrb[0].mxu0
        %v2583 = vpop.f32.mrb[0].mxu0
        %v2584 = vadd.f32 %v2468, %v2583
        %v2585 = vpop.f32.mrb[0].mxu0
        %2586 = vmatprep.mubr.bf16.mxu0 0
        %2587 = vmatmul.mubr.bf16.gmra.mrb[0].mxu0 %v2501
        %v2588 = vpop.f32.mrb[0].mxu0
        %v2589 = vadd.f32 %v2468, %v2588
        %v2590 = vpop.f32.mrb[0].mxu0
        %v2591 = vpop.f32.mrb[0].mxu0
        %v2592 = vadd.f32 %v2468, %v2591
        %v2593 = vpop.f32.mrb[0].mxu0
        %2594 = vmatprep.mubr.bf16.mxu0 0
        %2595 = vmatmul.mubr.bf16.gmra.mrb[0].mxu0 %v2504
        %v2596 = vpop.f32.mrb[0].mxu0
        %v2597 = vadd.f32 %v2468, %v2596
        %v2598 = vpop.f32.mrb[0].mxu0
        %v2599 = vpop.f32.mrb[0].mxu0
        %v2600 = vadd.f32 %v2468, %v2599
        %v2601 = vpop.f32.mrb[0].mxu0
        %2602 = vdwg.mxu0
        %vm2603 = vcmp.gt.f32.partialorder %v2541, 0.0
        %vm2604 = vcmp.gt.f32.partialorder %v2544, 0.0
        %vm2605 = vcmp.gt.f32.partialorder %v2549, 0.0
        %vm2606 = vcmp.gt.f32.partialorder %v2552, 0.0
        %vm2607 = vcmp.gt.f32.partialorder %v2557, 0.0
        %vm2608 = vcmp.gt.f32.partialorder %v2560, 0.0
        %vm2609 = vcmp.gt.f32.partialorder %v2565, 0.0
        %vm2610 = vcmp.gt.f32.partialorder %v2568, 0.0
        %vm2611 = vcmp.gt.f32.partialorder %v2573, 0.0
        %vm2612 = vcmp.gt.f32.partialorder %v2576, 0.0
        %vm2613 = vcmp.gt.f32.partialorder %v2581, 0.0
        %vm2614 = vcmp.gt.f32.partialorder %v2584, 0.0
        %vm2615 = vcmp.gt.f32.partialorder %v2589, 0.0
        %vm2616 = vcmp.gt.f32.partialorder %v2592, 0.0
        %vm2617 = vcmp.gt.f32.partialorder %v2597, 0.0
        %vm2618 = vcmp.gt.f32.partialorder %v2600, 0.0
        %v2619 = vmin.f32 %v2541, 0.0
        %v2620 = vmin.f32 %v2544, 0.0
        %v2621 = vmin.f32 %v2549, 0.0
        %v2622 = vmin.f32 %v2552, 0.0
        %v2623 = vmin.f32 %v2557, 0.0
        %v2624 = vmin.f32 %v2560, 0.0
        %v2625 = vmin.f32 %v2565, 0.0
        %v2626 = vmin.f32 %v2568, 0.0
        %v2627 = vmin.f32 %v2573, 0.0
        %v2628 = vmin.f32 %v2576, 0.0
        %v2629 = vmin.f32 %v2581, 0.0
        %v2630 = vmin.f32 %v2584, 0.0
        %v2631 = vmin.f32 %v2589, 0.0
        %v2632 = vmin.f32 %v2592, 0.0
        %v2633 = vmin.f32 %v2597, 0.0
        %v2634 = vmin.f32 %v2600, 0.0
        %v2635 = vmul.f32 %v2619, 1.442695
        %v2636 = vpow.pop %v2635
        %v2637 = vmul.f32 %v2620, 1.442695
        %v2638 = vpow.pop %v2637
        %v2639 = vmul.f32 %v2621, 1.442695
        %v2640 = vpow.pop %v2639
        %v2641 = vmul.f32 %v2622, 1.442695
        %v2642 = vpow.pop %v2641
        %v2643 = vmul.f32 %v2623, 1.442695
        %v2644 = vpow.pop %v2643
        %v2645 = vmul.f32 %v2624, 1.442695
        %v2646 = vpow.pop %v2645
        %v2647 = vmul.f32 %v2625, 1.442695
        %v2648 = vpow.pop %v2647
        %v2649 = vmul.f32 %v2626, 1.442695
        %v2650 = vpow.pop %v2649
        %v2651 = vmul.f32 %v2627, 1.442695
        %v2652 = vpow.pop %v2651
        %v2653 = vmul.f32 %v2628, 1.442695
        %v2654 = vpow.pop %v2653
        %v2655 = vmul.f32 %v2629, 1.442695
        %v2656 = vpow.pop %v2655
        %v2657 = vmul.f32 %v2630, 1.442695
        %v2658 = vpow.pop %v2657
        %v2659 = vmul.f32 %v2631, 1.442695
        %v2660 = vpow.pop %v2659
        %v2661 = vmul.f32 %v2632, 1.442695
        %v2662 = vpow.pop %v2661
        %v2663 = vmul.f32 %v2633, 1.442695
        %v2664 = vpow.pop %v2663
        %v2665 = vmul.f32 %v2634, 1.442695
        %v2666 = vpow.pop %v2665
        %v2667 = vsub.f32 %v2636, 1.0
        %v2668 = vsub.f32 %v2638, 1.0
        %v2669 = vsub.f32 %v2640, 1.0
        %v2670 = vsub.f32 %v2642, 1.0
        %v2671 = vsub.f32 %v2644, 1.0
        %v2672 = vsub.f32 %v2646, 1.0
        %v2673 = vsub.f32 %v2648, 1.0
        %v2674 = vsub.f32 %v2650, 1.0
        %v2675 = vsub.f32 %v2652, 1.0
        %v2676 = vsub.f32 %v2654, 1.0
        %v2677 = vsub.f32 %v2656, 1.0
        %v2678 = vsub.f32 %v2658, 1.0
        %v2679 = vsub.f32 %v2660, 1.0
        %v2680 = vsub.f32 %v2662, 1.0
        %v2681 = vsub.f32 %v2664, 1.0
        %v2682 = vsub.f32 %v2666, 1.0
        %v2683 = vsel %vm2603, %v2541, %v2667
        %v2684 = vsel %vm2604, %v2544, %v2668
        %v2685 = vsel %vm2605, %v2549, %v2669
        %v2686 = vsel %vm2606, %v2552, %v2670
        %v2687 = vsel %vm2607, %v2557, %v2671
        %v2688 = vsel %vm2608, %v2560, %v2672
        %v2689 = vsel %vm2609, %v2565, %v2673
        %v2690 = vsel %vm2610, %v2568, %v2674
        %v2691 = vsel %vm2611, %v2573, %v2675
        %v2692 = vsel %vm2612, %v2576, %v2676
        %v2693 = vsel %vm2613, %v2581, %v2677
        %v2694 = vsel %vm2614, %v2584, %v2678
        %v2695 = vsel %vm2615, %v2589, %v2679
        %v2696 = vsel %vm2616, %v2592, %v2680
        %v2697 = vsel %vm2617, %v2597, %v2681
        %v2698 = vsel %vm2618, %v2600, %v2682
        %v2699 = vpack.c.bf16 %v2684, %v2683
        %v2700 = vpack.c.bf16 %v2686, %v2685
        %v2701 = vpack.c.bf16 %v2688, %v2687
        %v2702 = vpack.c.bf16 %v2690, %v2689
        %v2703 = vpack.c.bf16 %v2692, %v2691
        %v2704 = vpack.c.bf16 %v2694, %v2693
        %v2705 = vpack.c.bf16 %v2696, %v2695
        %v2706 = vpack.c.bf16 %v2698, %v2697
        %v2707 = vld [vmem:[%s15] sm:$0xf]
        %v2708 = vld [vmem:[%s15 + $0x4] sm:$0xf]
        %v2709 = vld [vmem:[#allocation2] sm:$0x1]
        %v2711 = vlaneseq
        %v2712 = vshrl.u32 %v2711, 7
        %v2713 = vsub.s32 0, %v2712
        %v2714 = vrot.slane %v2709, %v2713
        %v2718 = vunpack.c.l.b16 %v2707
        %v2719 = vunpack.c.l.b16 %v2708
        %v2720 = vpack.c.b16 %v2719, %v2718
        %vm2722 = vcmask 130048
        %v2724 = vsel %vm2722, %v2699, 0
        %v2727 = vsel %vm2722, %v2700, 0
        %v2730 = vsel %vm2722, %v2701, 0
        %v2733 = vsel %vm2722, %v2702, 0
        %v2736 = vsel %vm2722, %v2703, 0
        %v2739 = vsel %vm2722, %v2704, 0
        %v2742 = vsel %vm2722, %v2705, 0
        %v2745 = vsel %vm2722, %v2706, 0
        %2747 = vmatprep.subr.bf16.mxu0 0
        %2748 = vmatpush1.bf16.msra.mxu0 %v2720
        %2749 = vmatprep.subr.bf16.mxu0 0
        %2750 = vmatpush1.bf16.msra.mxu0 0
        %2751 = vmatprep.subr.bf16.mxu0 0
        %2752 = vmatpush1.bf16.msra.mxu0 0
        %2753 = vmatprep.subr.bf16.mxu0 0
        %2754 = vmatpush1.bf16.msra.mxu0 0
        %2755 = vmatprep.subr.bf16.mxu0 0
        %2756 = vmatpush1.bf16.msra.mxu0 0
        %2757 = vmatprep.subr.bf16.mxu0 0
        %2758 = vmatpush1.bf16.msra.mxu0 0
        %2759 = vmatprep.subr.bf16.mxu0 0
        %2760 = vmatpush1.bf16.msra.mxu0 0
        %2761 = vmatprep.subr.bf16.mxu0 0
        %2762 = vmatpush1.bf16.msra.mxu0 0
        %2763 = vmatprep.subr.bf16.mxu0 0
        %2764 = vmatpush1.bf16.msra.mxu0 0
        %2765 = vmatprep.subr.bf16.mxu0 0
        %2766 = vmatpush1.bf16.msra.mxu0 0
        %2767 = vmatprep.subr.bf16.mxu0 0
        %2768 = vmatpush1.bf16.msra.mxu0 0
        %2769 = vmatprep.subr.bf16.mxu0 0
        %2770 = vmatpush1.bf16.msra.mxu0 0
        %2771 = vmatprep.subr.bf16.mxu0 0
        %2772 = vmatpush1.bf16.msra.mxu0 0
        %2773 = vmatprep.subr.bf16.mxu0 0
        %2774 = vmatpush1.bf16.msra.mxu0 0
        %2775 = vmatprep.subr.bf16.mxu0 0
        %2776 = vmatpush1.bf16.msra.mxu0 0
        %2777 = vmatprep.subr.bf16.mxu0 0
        %2778 = vmatpush1.bf16.msra.mxu0 0
        %2779 = vmatprep.mubr.bf16.mxu0 0
        %2780 = vmatmul.mubr.bf16.gmra.mrb[0].mxu0 %v2724
        %v2781 = vpop.f32.mrb[0].mxu0
        %v2782 = vadd.f32 %v2714, %v2781
        %v2783 = vpop.f32.mrb[0].mxu0
        %v2784 = vpop.f32.mrb[0].mxu0
        %v2785 = vadd.f32 %v2714, %v2784
        %v2786 = vpop.f32.mrb[0].mxu0
        %2787 = vmatprep.mubr.bf16.mxu0 0
        %2788 = vmatmul.mubr.bf16.gmra.mrb[0].mxu0 %v2727
        %v2789 = vpop.f32.mrb[0].mxu0
        %v2790 = vadd.f32 %v2714, %v2789
        %v2791 = vpop.f32.mrb[0].mxu0
        %v2792 = vpop.f32.mrb[0].mxu0
        %v2793 = vadd.f32 %v2714, %v2792
        %v2794 = vpop.f32.mrb[0].mxu0
        %2795 = vmatprep.mubr.bf16.mxu0 0
        %2796 = vmatmul.mubr.bf16.gmra.mrb[0].mxu0 %v2730
        %v2797 = vpop.f32.mrb[0].mxu0
        %v2798 = vadd.f32 %v2714, %v2797
        %v2799 = vpop.f32.mrb[0].mxu0
        %v2800 = vpop.f32.mrb[0].mxu0
        %v2801 = vadd.f32 %v2714, %v2800
        %v2802 = vpop.f32.mrb[0].mxu0
        %2803 = vmatprep.mubr.bf16.mxu0 0
        %2804 = vmatmul.mubr.bf16.gmra.mrb[0].mxu0 %v2733
        %v2805 = vpop.f32.mrb[0].mxu0
        %v2806 = vadd.f32 %v2714, %v2805
        %v2807 = vpop.f32.mrb[0].mxu0
        %v2808 = vpop.f32.mrb[0].mxu0
        %v2809 = vadd.f32 %v2714, %v2808
        %v2810 = vpop.f32.mrb[0].mxu0
        %2811 = vmatprep.mubr.bf16.mxu0 0
        %2812 = vmatmul.mubr.bf16.gmra.mrb[0].mxu0 %v2736
        %v2813 = vpop.f32.mrb[0].mxu0
        %v2814 = vadd.f32 %v2714, %v2813
        %v2815 = vpop.f32.mrb[0].mxu0
        %v2816 = vpop.f32.mrb[0].mxu0
        %v2817 = vadd.f32 %v2714, %v2816
        %v2818 = vpop.f32.mrb[0].mxu0
        %2819 = vmatprep.mubr.bf16.mxu0 0
        %2820 = vmatmul.mubr.bf16.gmra.mrb[0].mxu0 %v2739
        %v2821 = vpop.f32.mrb[0].mxu0
        %v2822 = vadd.f32 %v2714, %v2821
        %v2823 = vpop.f32.mrb[0].mxu0
        %v2824 = vpop.f32.mrb[0].mxu0
        %v2825 = vadd.f32 %v2714, %v2824
        %v2826 = vpop.f32.mrb[0].mxu0
        %2827 = vmatprep.mubr.bf16.mxu0 0
        %2828 = vmatmul.mubr.bf16.gmra.mrb[0].mxu0 %v2742
        %v2829 = vpop.f32.mrb[0].mxu0
        %v2830 = vadd.f32 %v2714, %v2829
        %v2831 = vpop.f32.mrb[0].mxu0
        %v2832 = vpop.f32.mrb[0].mxu0
        %v2833 = vadd.f32 %v2714, %v2832
        %v2834 = vpop.f32.mrb[0].mxu0
        %2835 = vmatprep.mubr.bf16.mxu0 0
        %2836 = vmatmul.mubr.bf16.gmra.mrb[0].mxu0 %v2745
        %v2837 = vpop.f32.mrb[0].mxu0
        %v2838 = vadd.f32 %v2714, %v2837
        %v2839 = vpop.f32.mrb[0].mxu0
        %v2840 = vpop.f32.mrb[0].mxu0
        %v2841 = vadd.f32 %v2714, %v2840
        %v2842 = vpop.f32.mrb[0].mxu0
        %2843 = vdwg.mxu0
        %2845 = vset.pattern.permute.xlu0 0
        %2846 = vperm.xlu0 %2845, %v2782
        %v2847 = vpop.permute.xlu0 %2846
        %2850 = vset.pattern.permute.xlu0 0
        %2851 = vperm.xlu0 %2850, %v2785
        %v2852 = vpop.permute.xlu0 %2851
        %2855 = vset.pattern.permute.xlu0 0
        %2856 = vperm.xlu0 %2855, %v2790
        %v2857 = vpop.permute.xlu0 %2856
        %2860 = vset.pattern.permute.xlu0 0
        %2861 = vperm.xlu0 %2860, %v2793
        %v2862 = vpop.permute.xlu0 %2861
        %2865 = vset.pattern.permute.xlu0 0
        %2866 = vperm.xlu0 %2865, %v2798
        %v2867 = vpop.permute.xlu0 %2866
        %2870 = vset.pattern.permute.xlu0 0
        %2871 = vperm.xlu0 %2870, %v2801
        %v2872 = vpop.permute.xlu0 %2871
        %2875 = vset.pattern.permute.xlu0 0
        %2876 = vperm.xlu0 %2875, %v2806
        %v2877 = vpop.permute.xlu0 %2876
        %2880 = vset.pattern.permute.xlu0 0
        %2881 = vperm.xlu0 %2880, %v2809
        %v2882 = vpop.permute.xlu0 %2881
        %2885 = vset.pattern.permute.xlu0 0
        %2886 = vperm.xlu0 %2885, %v2814
        %v2887 = vpop.permute.xlu0 %2886
        %2890 = vset.pattern.permute.xlu0 0
        %2891 = vperm.xlu0 %2890, %v2817
        %v2892 = vpop.permute.xlu0 %2891
        %2895 = vset.pattern.permute.xlu0 0
        %2896 = vperm.xlu0 %2895, %v2822
        %v2897 = vpop.permute.xlu0 %2896
        %2900 = vset.pattern.permute.xlu0 0
        %2901 = vperm.xlu0 %2900, %v2825
        %v2902 = vpop.permute.xlu0 %2901
        %2905 = vset.pattern.permute.xlu0 0
        %2906 = vperm.xlu0 %2905, %v2830
        %v2907 = vpop.permute.xlu0 %2906
        %2910 = vset.pattern.permute.xlu0 0
        %2911 = vperm.xlu0 %2910, %v2833
        %v2912 = vpop.permute.xlu0 %2911
        %2915 = vset.pattern.permute.xlu0 0
        %2916 = vperm.xlu0 %2915, %v2838
        %v2917 = vpop.permute.xlu0 %2916
        %2920 = vset.pattern.permute.xlu0 0
        %2921 = vperm.xlu0 %2920, %v2841
        %v2922 = vpop.permute.xlu0 %2921
        %2924 = vst [vmem:[%s562] sm:$0xff] %v2847
        %2925 = vst [vmem:[%s562 + $0x8] sm:$0xff] %v2852
        %2926 = vst [vmem:[%s562 + $0x10] sm:$0xff] %v2857
        %2927 = vst [vmem:[%s562 + $0x18] sm:$0xff] %v2862
        %2928 = vst [vmem:[%s562 + $0x20] sm:$0xff] %v2867
        %2929 = vst [vmem:[%s562 + $0x28] sm:$0xff] %v2872
        %2930 = vst [vmem:[%s562 + $0x30] sm:$0xff] %v2877
        %2931 = vst [vmem:[%s562 + $0x38] sm:$0xff] %v2882
        %2932 = vst [vmem:[%s562 + $0x40] sm:$0xff] %v2887
        %2933 = vst [vmem:[%s562 + $0x48] sm:$0xff] %v2892
        %2934 = vst [vmem:[%s562 + $0x50] sm:$0xff] %v2897
        %2935 = vst [vmem:[%s562 + $0x58] sm:$0xff] %v2902
        %2936 = vst [vmem:[%s562 + $0x60] sm:$0xff] %v2907
        %2937 = vst [vmem:[%s562 + $0x68] sm:$0xff] %v2912
        %2938 = vst [vmem:[%s562 + $0x70] sm:$0xff] %v2917
        %2939 = vst [vmem:[%s562 + $0x78] sm:$0xff] %v2922
        %s2940 = sand.u32 %s408, 1
        %s2941 = scalar_lea.sflag [#allocation4], %s2940
        %s2942 = sand.u32 %s408, 1
        %s2943 = smul.addr %s2942, 128
        %s2944 = scalar_lea.vmem [#allocation3], %s2943
        // Predicated region
        $region89: #{tpu_custom_call.1} parent=87 // pred_check
          %p2945 = pneg %p418
        $region90: #{tpu_custom_call.1} parent=87 // pred_check_branch
          %2947 = sbr.rel (%p2945) target = $region92
        $region91: #{tpu_custom_call.1} parent=87 // pred_region
          %s2948 = smul.u32 16, %s33
          %s2950 = ssub.s32 2048, 2048
          %2951 = vsyncadd %s2941, %s2950
          %s2952 = smul.addr %s2948, 128
          %s2953 = scalar_lea.hbm %s17, %s2952
          %s2954 = sshll.u32 %s2944, 4
          %s2955 = int_to_ptr.vmem [resolvable:$true] %s2954
          %2960 = dma.vmem_to_hbm [thread:$0]  %s2955, 2048, %s2953, %s2941, 128, 128, 8
        $region92: #{tpu_custom_call.1} parent=87 // pred_fallthru
          _
      $region88: #{tpu_custom_call.1} parent=5 // pred_fallthru
        _
      %p2961 = scmp.le.s32.totalorder 2, %s28
      // Predicated region
      $region93: #{tpu_custom_call.1} parent=5 // pred_check
        %p2962 = pneg %p2961
      $region94: #{tpu_custom_call.1} parent=5 // pred_check_branch
        %2964 = sbr.rel (%p2962) target = $region96
      $region95: #{tpu_custom_call.1} parent=5 // pred_region
        %s2965 = ssub.s32 %s28, 2
        // Predicated region
        $region97: #{tpu_custom_call.1} parent=95 // pred_check
          %p2966 = pneg %p424
        $region98: #{tpu_custom_call.1} parent=95 // pred_check_branch
          %2968 = sbr.rel (%p2966) target = $region100
        $region99: #{tpu_custom_call.1} parent=95 // pred_region
          %s2969 = sand.u32 %s409, 1
          %s2970 = scalar_lea.sflag [#allocation4], %s2969
          %s2971 = sand.u32 %s409, 1
          %s2972 = smul.addr %s2971, 128
          %s2973 = scalar_lea.vmem [#allocation3], %s2972
          %2974 = dma.done %s2970, 2048
        $region100: #{tpu_custom_call.1} parent=95 // pred_fallthru
          _
      $region96: #{tpu_custom_call.1} parent=5 // pred_fallthru
        _
    $region6: #{tpu_custom_call.1} parent=1 // loop_footer
      %s32 = sadd.s32 1, %s28
    $region7: #{tpu_custom_call.1} parent=1 // loop_footer_branch
      %27 = sbr.rel target = $region3
    $region8: #{tpu_custom_call.1} parent=1 // loop_exit
      _
    %2975 = vsyncpa [#allocation4], 1
    %s2976 = scalar_lea.sflag [#allocation4], 1
    %2977 = vsyncpa %s2976, 1

</llo_original>
